<compile_context>
chip_gen: v7x
topology: tpu7x:2x2x1
jax: 0.10.0
libtpu: 0.0.40
codegen_flags: <defaults>
</compile_context>

<pallas_src>
import functools

import jax
import jax.numpy as jnp
from jax.experimental import pallas as pl
from jax.experimental.pallas import tpu as pltpu


def _conv_weight_to_row_matmul(w, out_w):
    """HWIO conv weight -> per-kh banded row-matmul matrices (W padding folded).

    w: (KH, KW, Cin, Cout).  Returns R of shape (KH, out_w*Cin, out_w*Cout)
    with
        R[kh, w_in*Cin + c, w_out*Cout + o] = w[kh, w_in - w_out + pw, c, o]
    (entry present only when 0 <= w_in - w_out + pw < KW), so that a stride-1
    'same' conv over a channels-fastest image x2d (shape (H, W*Cin), NO lane
    padding) is
        out2d[h, :] = sum_kh  x2d[h + kh - ph, :] @ R[kh]
    with out-of-range rows h+kh-ph contributing zero.
    """
    KH, KW, Cin, Cout = w.shape
    pw = (KW - 1) // 2
    Wp = out_w + KW - 1
    wk = w.reshape(KH, KW * Cin, Cout)
    # One copy of the (KW*Cin, Cout) block per output column position ...
    blocks = jnp.broadcast_to(wk[:, None], (KH, out_w, KW * Cin, Cout))
    # ... right-pad each copy so flattening shifts block w0 by w0*Cin rows.
    blocks = jnp.pad(blocks, ((0, 0), (0, 0), (0, out_w * Cin), (0, 0)))
    flat = blocks.reshape(KH, out_w * (Wp * Cin + Cin), Cout)
    banded = flat[:, : out_w * Wp * Cin].reshape(KH, out_w, Wp * Cin, Cout)
    r_padded = banded.transpose(0, 2, 1, 3).reshape(KH, Wp * Cin, out_w * Cout)
    # Fold the 'same' W padding into the band: drop the rows that would have
    # multiplied the zero-padded columns.  K shrinks Wp*Cin -> out_w*Cin.
    return r_padded[:, pw * Cin:(pw + out_w) * Cin, :]


def _prepare_conv_params(w1, b1, w2, b2, W):
    """Banded bf16 weights + f32 row-tiled biases (hoisted out of the call)."""
    r1 = _conv_weight_to_row_matmul(w1, W).astype(jnp.bfloat16)
    r2 = _conv_weight_to_row_matmul(w2, W).astype(jnp.bfloat16)
    C1, Cout = w1.shape[-1], w2.shape[-1]
    b1r = jnp.tile(b1, W).reshape(1, W * C1).astype(jnp.float32)
    b2r = jnp.tile(b2, W).reshape(1, W * Cout).astype(jnp.float32)
    return r1, b1r, r2, b2r


def _pick_batch_tile(N, H, target_rows=128):
    """Images per grid step: M = bt*H ~= 128 rows, multiple of 8 (or full)."""
    bt = max(1, min(N, max(1, target_rows // max(H, 1))))
    while bt < N and (bt * H) % 8 != 0:
        bt += 1
    if (bt * H) % 8 != 0:
        bt = N  # full-extent row block is always layout-legal
    return bt


def _fused_conv_kernel(x_ref, r1_ref, b1_ref, r2_ref, b2_ref, o_ref,
                       xs1_ref, xs2_ref, *, H, M, WCin, WC1, WCout, KH1, KH2):
    """conv5x5 'same' + bias + ReLU + conv7x7 'same' + bias for B_tile images.

    x_ref : (M, W*Cin)   M = B_tile*H rows, channels fastest on lanes
    rN_ref: (KHn, W*Cn_in, W*Cn_out) banded bf16 row-matmul weights
    bN_ref: (1, W*Cn_out) f32 bias tiled across W
    o_ref : (M, W*Cout)  lane-dense output block
    xs1/xs2: f32 VMEM scratch (M + KH - 1, K) holding the conv input at row
             offset ph so shifted slabs xs[kh:kh+M] are always in bounds.
    """
    f32, bf16 = jnp.float32, jnp.bfloat16
    ph1, ph2 = KH1 // 2, KH2 // 2

    # Row-within-image index; shared by both convs' image-boundary masks.
    row_in_img = jax.lax.broadcasted_iota(jnp.int32, (M, 1), 0) % H

    def shifted_lhs(xs_ref, kh, ph):
        # (M, K) slab shifted by d = kh - ph rows within each image; rows whose
        # source falls outside its own image (or in the stack halo) -> 0.
        d = kh - ph
        slab = xs_ref[kh:kh + M, :]
        if d > 0:
            slab = jnp.where(row_in_img < (H - d), slab, 0.0)
        elif d < 0:
            slab = jnp.where(row_in_img >= (-d), slab, 0.0)
        return slab.astype(bf16)

    # ---------------- conv1 (5x5 'same') + bias + ReLU ----------------------
    # Re-zero only the 2*ph1 halo rows every step (megacore-safe: never gated
    # on program_id); the interior is overwritten right after.
    if ph1:
        xs1_ref[0:ph1, :] = jnp.zeros((ph1, WCin), f32)
        xs1_ref[ph1 + M:ph1 + M + ph1, :] = jnp.zeros((ph1, WCin), f32)
    xs1_ref[ph1:ph1 + M, :] = x_ref[...].astype(f32)

    acc1 = jnp.zeros((M, WC1), f32)
    for kh in range(KH1):          # KH1 matmuls, each (M, W*Cin) @ (W*Cin, W*C1)
        acc1 = acc1 + jnp.dot(shifted_lhs(xs1_ref, kh, ph1), r1_ref[kh],
                              preferred_element_type=f32)
    act1 = jnp.maximum(acc1 + b1_ref[...], 0.0)       # bias + ReLU in f32

    # ---------------- conv2 (7x7 'same') + bias ------------------------------
    # Intermediate activation never leaves VMEM.
    if ph2:
        xs2_ref[0:ph2, :] = jnp.zeros((ph2, WC1), f32)
        xs2_ref[ph2 + M:ph2 + M + ph2, :] = jnp.zeros((ph2, WC1), f32)
    xs2_ref[ph2:ph2 + M, :] = act1

    acc2 = jnp.zeros((M, WCout), f32)
    for kh in range(KH2):          # KH2 matmuls, each (M, W*C1) @ (W*C1, W*Cout)
        acc2 = acc2 + jnp.dot(shifted_lhs(xs2_ref, kh, ph2), r2_ref[kh],
                              preferred_element_type=f32)
    o_ref[...] = (acc2 + b2_ref[...]).astype(o_ref.dtype)


def embedding_conv_reducer_forward_nhwc(x_nhwc, r1, b1r, r2, b2r):
    """Channels-last fused forward: (N, H, W, Cin) -> (N, H, W, Cout).

    No transposes: the (N, H, W, C) -> (N*H, W*C) reshape is a contiguous
    (free) row-major merge.
    """
    N, H, W, Cin = x_nhwc.shape
    KH1, WCin, WC1 = r1.shape
    KH2, _, WCout = r2.shape
    assert WCin == W * Cin and r2.shape[1] == WC1
    Cout = WCout // W

    bt = _pick_batch_tile(N, H)                 # images per grid step
    n_pad = (-N) % bt
    x_flat = x_nhwc.reshape(N, H, WCin)
    if n_pad:
        x_flat = jnp.concatenate(
            [x_flat, jnp.zeros((n_pad, H, WCin), x_flat.dtype)], axis=0)
    Np = N + n_pad
    x_rows = x_flat.reshape(Np * H, WCin)       # (rows, lanes) slab
    M = bt * H                                  # matmul M per grid step

    kernel = functools.partial(
        _fused_conv_kernel, H=H, M=M, WCin=WCin, WC1=WC1, WCout=WCout,
        KH1=KH1, KH2=KH2)

    out_rows = pl.pallas_call(
        kernel,
        out_shape=jax.ShapeDtypeStruct((Np * H, WCout), x_nhwc.dtype),
        grid=(Np // bt,),
        in_specs=[
            pl.BlockSpec((M, WCin), lambda i: (i, 0)),
            pl.BlockSpec((KH1, WCin, WC1), lambda i: (0, 0, 0)),
            pl.BlockSpec((1, WC1), lambda i: (0, 0)),
            pl.BlockSpec((KH2, WC1, WCout), lambda i: (0, 0, 0)),
            pl.BlockSpec((1, WCout), lambda i: (0, 0)),
        ],
        out_specs=pl.BlockSpec((M, WCout), lambda i: (i, 0)),
        scratch_shapes=[
            pltpu.VMEM((M + KH1 - 1, WCin), jnp.float32),  # conv1 row-padded in
            pltpu.VMEM((M + KH2 - 1, WC1), jnp.float32),   # conv2 row-padded in
        ],
        compiler_params=pltpu.CompilerParams(dimension_semantics=("parallel",)),
    )(x_rows, r1, b1r, r2, b2r)

    out = out_rows.reshape(Np, H, W, Cout)
    return out[:N] if n_pad else out


@jax.jit
def embedding_conv_reducer_forward(x_nchw, r1, b1r, r2, b2r):
    """NCHW wrapper kept for PyTorch-interface parity.

    Prefer the channels-last entry point end-to-end: these two transposes are
    full HBM read+write passes that the fused kernel itself does not need.
    """
    x_nhwc = jnp.transpose(x_nchw, (0, 2, 3, 1))
    y = embedding_conv_reducer_forward_nhwc(x_nhwc, r1, b1r, r2, b2r)
    return jnp.transpose(y, (0, 3, 1, 2))


class EmbeddingConvReducerPallas:
    """Pallas equivalent of the PyTorch EmbeddingConvReducer forward pass."""

    def __init__(self, in_channels, out_channels, key):
        k1, k2, k3, k4 = jax.random.split(key, 4)
        fan1 = in_channels * 5 * 5
        bound1 = 1.0 / float(fan1) ** 0.5
        self.w1 = jax.random.uniform(
            k1, (5, 5, in_channels, in_channels), jnp.float32, -bound1, bound1)
        self.b1 = jax.random.uniform(
            k2, (in_channels,), jnp.float32, -bound1, bound1)
        fan2 = in_channels * 7 * 7
        bound2 = 1.0 / float(fan2) ** 0.5
        self.w2 = jax.random.uniform(
            k3, (7, 7, in_channels, out_channels), jnp.float32, -bound2, bound2)
        self.b2 = jax.random.uniform(
            k4, (out_channels,), jnp.float32, -bound2, bound2)
        self._param_cache = {}  # image width -> pre-banded bf16 weights
        # TODO(synk): checkpoint load/save and the fit() training loop of the
        # PyTorch module are host-side utilities with no Pallas equivalent.

    def _params_for_width(self, W):
        if W not in self._param_cache:
            self._param_cache[W] = _prepare_conv_params(
                self.w1, self.b1, self.w2, self.b2, W)
        return self._param_cache[W]

    def __call__(self, x_nchw):
        return embedding_conv_reducer_forward(
            x_nchw, *self._params_for_width(x_nchw.shape[-1]))

    def forward_channels_last(self, x_nhwc):
        return embedding_conv_reducer_forward_nhwc(
            x_nhwc, *self._params_for_width(x_nhwc.shape[2]))


def _reference_forward(x_nchw, w1, b1, w2, b2):
    """Pure-JAX (XLA conv) reference for correctness checking."""
    def conv(x, w, b):
        y = jax.lax.conv_general_dilated(
            x, w, window_strides=(1, 1), padding="SAME",
            dimension_numbers=("NCHW", "HWIO", "NCHW"))
        return y + b[None, :, None, None]

    y = jax.nn.relu(conv(x_nchw, w1, b1))
    return conv(y, w2, b2)


if __name__ == "__main__":
    key = jax.random.PRNGKey(0)
    k_x, k_p = jax.random.split(key)

    batch, in_channels, out_channels, spatial = 2, 4, 8, 16
    x = jax.random.normal(k_x, (batch, in_channels, spatial, spatial),
                          jnp.float32)

    model = EmbeddingConvReducerPallas(in_channels, out_channels, k_p)

    out = jax.block_until_ready(model(x))
    assert out.shape == (batch, out_channels, spatial, spatial), out.shape

    ref = jax.block_until_ready(
        _reference_forward(x, model.w1, model.b1, model.w2, model.b2))
    # Both the Pallas kernel (explicit bf16 weight/activation feeds) and the
    # XLA reference conv (default TPU precision = single-pass bf16 multiplies,
    # f32 accumulation) round matmul inputs to bf16, so agreement is limited
    # to roughly bf16-epsilon * sqrt(K) of the output scale (~1e-3..5e-3 abs
    # here).  The tolerance reflects that deliberately; it is still 1-2 orders
    # of magnitude tighter than any indexing/mask bug would produce.  For f32
    # parity, use f32 banded weights + precision=jax.lax.Precision.HIGHEST.
    assert jnp.allclose(out, ref, rtol=2e-2, atol=2e-2), (
        float(jnp.max(jnp.abs(out - ref))))

    print("KERNEL_OK")
</pallas_src>

<mosaic_0001>
module attributes {stable_mosaic.version = 11 : i64} {
  func.func @_fused_conv_kernel(%arg0: i32, %arg1: memref<32x64xf32, #tpu.memory_space<vmem>>, %arg2: memref<5x64x64xbf16, #tpu.memory_space<vmem>>, %arg3: memref<1x64xf32, #tpu.memory_space<vmem>>, %arg4: memref<7x64x128xbf16, #tpu.memory_space<vmem>>, %arg5: memref<1x128xf32, #tpu.memory_space<vmem>>, %arg6: memref<32x128xf32, #tpu.memory_space<vmem>>, %arg7: memref<36x64xf32, #tpu.memory_space<vmem>>, %arg8: memref<38x64xf32, #tpu.memory_space<vmem>>) attributes {dimension_semantics = [#tpu.dimension_semantics<parallel>], iteration_bounds = array<i64: 1>, scalar_prefetch = 0 : i64, scratch_operands = 2 : i64, tpu.core_type = #tpu.core_type<tc>, window_params = [{transform_indices = @transform_0, window_bounds = array<i64: 32, 64>}, {pipeline_mode = #tpu.pipeline_mode<synchronous>, transform_indices = @transform_1, window_bounds = array<i64: 5, 64, 64>}, {pipeline_mode = #tpu.pipeline_mode<synchronous>, transform_indices = @transform_2, window_bounds = array<i64: 1, 64>}, {pipeline_mode = #tpu.pipeline_mode<synchronous>, transform_indices = @transform_3, window_bounds = array<i64: 7, 64, 128>}, {pipeline_mode = #tpu.pipeline_mode<synchronous>, transform_indices = @transform_4, window_bounds = array<i64: 1, 128>}, {transform_indices = @transform_5, window_bounds = array<i64: 32, 128>}]} {
    %0 = tpu.iota {dimensions = array<i32: 0>} : vector<32x1xi32>
    %c16_i32 = arith.constant 16 : i32
    %c0_i32 = arith.constant 0 : i32
    %1 = arith.cmpi eq, %c16_i32, %c0_i32 : i32
    %c1_i32 = arith.constant 1 : i32
    %2 = arith.select %1, %c1_i32, %c16_i32 : i32
    %3 = vector.broadcast %2 : i32 to vector<32x1xi32>
    %4 = arith.remsi %0, %3 : vector<32x1xi32>
    %c0_i32_0 = arith.constant 0 : i32
    %5 = vector.broadcast %c0_i32_0 : i32 to vector<32x1xi32>
    %6 = arith.cmpi ne, %4, %5 : vector<32x1xi32>
    %c0_i32_1 = arith.constant 0 : i32
    %7 = vector.broadcast %c0_i32_1 : i32 to vector<32x1xi32>
    %8 = arith.cmpi slt, %4, %7 : vector<32x1xi32>
    %c0_i32_2 = arith.constant 0 : i32
    %9 = arith.cmpi slt, %2, %c0_i32_2 : i32
    %10 = vector.broadcast %9 : i1 to vector<32x1xi1>
    %11 = vector.broadcast %10 : vector<32x1xi1> to vector<32x1xi1>
    %12 = arith.xori %8, %11 : vector<32x1xi1>
    %13 = arith.andi %12, %6 : vector<32x1xi1>
    %14 = vector.broadcast %2 : i32 to vector<32x1xi32>
    %15 = arith.addi %4, %14 : vector<32x1xi32>
    %16 = arith.select %13, %15, %4 : vector<32x1xi1>, vector<32x1xi32>
    %cst = arith.constant 0.000000e+00 : f32
    %17 = vector.broadcast %cst : f32 to vector<2x64xf32>
    %c0 = arith.constant 0 : index
    %c0_3 = arith.constant 0 : index
    %18 = vector.load %arg7[%c0, %c0_3] : memref<36x64xf32, #tpu.memory_space<vmem>>, vector<2x64xf32>
    tpu.vector_store %arg7[%c0, %c0_3], %17 {strides = array<i32>} : memref<36x64xf32, #tpu.memory_space<vmem>>, vector<2x64xf32>,
    %cst_4 = arith.constant 0.000000e+00 : f32
    %19 = vector.broadcast %cst_4 : f32 to vector<2x64xf32>
    %c34 = arith.constant 34 : index
    %c0_5 = arith.constant 0 : index
    %20 = vector.load %arg7[%c34, %c0_5] : memref<36x64xf32, #tpu.memory_space<vmem>>, vector<2x64xf32>
    tpu.vector_store %arg7[%c34, %c0_5], %19 {strides = array<i32>} : memref<36x64xf32, #tpu.memory_space<vmem>>, vector<2x64xf32>,
    %c0_6 = arith.constant 0 : index
    %c0_7 = arith.constant 0 : index
    %21 = vector.load %arg1[%c0_6, %c0_7] : memref<32x64xf32, #tpu.memory_space<vmem>>, vector<32x64xf32>
    %c2 = arith.constant 2 : index
    %c0_8 = arith.constant 0 : index
    %22 = vector.load %arg7[%c2, %c0_8] : memref<36x64xf32, #tpu.memory_space<vmem>>, vector<32x64xf32>
    tpu.vector_store %arg7[%c2, %c0_8], %21 {strides = array<i32>} : memref<36x64xf32, #tpu.memory_space<vmem>>, vector<32x64xf32>,
    %cst_9 = arith.constant 0.000000e+00 : f32
    %23 = vector.broadcast %cst_9 : f32 to vector<32x64xf32>
    %c0_10 = arith.constant 0 : index
    %c0_11 = arith.constant 0 : index
    %24 = vector.load %arg7[%c0_10, %c0_11] : memref<36x64xf32, #tpu.memory_space<vmem>>, vector<32x64xf32>
    %c2_i32 = arith.constant 2 : i32
    %25 = vector.broadcast %c2_i32 : i32 to vector<32x1xi32>
    %26 = arith.cmpi sge, %16, %25 : vector<32x1xi32>
    %cst_12 = arith.constant 0.000000e+00 : f32
    %27 = vector.shape_cast %26 : vector<32x1xi1> to vector<32x1xi1>
    %28 = vector.broadcast %27 : vector<32x1xi1> to vector<32x64xi1>
    %29 = vector.broadcast %cst_12 : f32 to vector<32x64xf32>
    %30 = arith.select %28, %24, %29 : vector<32x64xi1>, vector<32x64xf32>
    %31 = arith.truncf %30 : vector<32x64xf32> to vector<32x64xbf16>
    %c0_13 = arith.constant 0 : index
    %c0_14 = arith.constant 0 : index
    %c0_15 = arith.constant 0 : index
    %32 = vector.load %arg2[%c0_13, %c0_14, %c0_15] : memref<5x64x64xbf16, #tpu.memory_space<vmem>>, vector<1x64x64xbf16>
    %33 = vector.shape_cast %32 : vector<1x64x64xbf16> to vector<64x64xbf16>
    %cst_16 = arith.constant dense<0.000000e+00> : vector<32x64xf32>
    %34 = tpu.matmul %31, %33, %cst_16 {dimension_numbers = #tpu.dot_dimension_numbers<[1], [0], [0], [1], [0, 0, 1, 1], [], []>} : vector<32x64xbf16>, vector<64x64xbf16>, vector<32x64xf32> -> vector<32x64xf32>
    %35 = arith.addf %23, %34 : vector<32x64xf32>
    %c1 = arith.constant 1 : index
    %c0_17 = arith.constant 0 : index
    %36 = vector.load %arg7[%c1, %c0_17] : memref<36x64xf32, #tpu.memory_space<vmem>>, vector<32x64xf32>
    %c1_i32_18 = arith.constant 1 : i32
    %37 = vector.broadcast %c1_i32_18 : i32 to vector<32x1xi32>
    %38 = arith.cmpi sge, %16, %37 : vector<32x1xi32>
    %cst_19 = arith.constant 0.000000e+00 : f32
    %39 = vector.shape_cast %38 : vector<32x1xi1> to vector<32x1xi1>
    %40 = vector.broadcast %39 : vector<32x1xi1> to vector<32x64xi1>
    %41 = vector.broadcast %cst_19 : f32 to vector<32x64xf32>
    %42 = arith.select %40, %36, %41 : vector<32x64xi1>, vector<32x64xf32>
    %43 = arith.truncf %42 : vector<32x64xf32> to vector<32x64xbf16>
    %c1_20 = arith.constant 1 : index
    %c0_21 = arith.constant 0 : index
    %c0_22 = arith.constant 0 : index
    %44 = vector.load %arg2[%c1_20, %c0_21, %c0_22] : memref<5x64x64xbf16, #tpu.memory_space<vmem>>, vector<1x64x64xbf16>
    %45 = vector.shape_cast %44 : vector<1x64x64xbf16> to vector<64x64xbf16>
    %cst_23 = arith.constant dense<0.000000e+00> : vector<32x64xf32>
    %46 = tpu.matmul %43, %45, %cst_23 {dimension_numbers = #tpu.dot_dimension_numbers<[1], [0], [0], [1], [0, 0, 1, 1], [], []>} : vector<32x64xbf16>, vector<64x64xbf16>, vector<32x64xf32> -> vector<32x64xf32>
    %47 = arith.addf %35, %46 : vector<32x64xf32>
    %c2_24 = arith.constant 2 : index
    %c0_25 = arith.constant 0 : index
    %48 = vector.load %arg7[%c2_24, %c0_25] : memref<36x64xf32, #tpu.memory_space<vmem>>, vector<32x64xf32>
    %49 = arith.truncf %48 : vector<32x64xf32> to vector<32x64xbf16>
    %c2_26 = arith.constant 2 : index
    %c0_27 = arith.constant 0 : index
    %c0_28 = arith.constant 0 : index
    %50 = vector.load %arg2[%c2_26, %c0_27, %c0_28] : memref<5x64x64xbf16, #tpu.memory_space<vmem>>, vector<1x64x64xbf16>
    %51 = vector.shape_cast %50 : vector<1x64x64xbf16> to vector<64x64xbf16>
    %cst_29 = arith.constant dense<0.000000e+00> : vector<32x64xf32>
    %52 = tpu.matmul %49, %51, %cst_29 {dimension_numbers = #tpu.dot_dimension_numbers<[1], [0], [0], [1], [0, 0, 1, 1], [], []>} : vector<32x64xbf16>, vector<64x64xbf16>, vector<32x64xf32> -> vector<32x64xf32>
    %53 = arith.addf %47, %52 : vector<32x64xf32>
    %c3 = arith.constant 3 : index
    %c0_30 = arith.constant 0 : index
    %54 = vector.load %arg7[%c3, %c0_30] : memref<36x64xf32, #tpu.memory_space<vmem>>, vector<32x64xf32>
    %c15_i32 = arith.constant 15 : i32
    %55 = vector.broadcast %c15_i32 : i32 to vector<32x1xi32>
    %56 = arith.cmpi slt, %16, %55 : vector<32x1xi32>
    %cst_31 = arith.constant 0.000000e+00 : f32
    %57 = vector.shape_cast %56 : vector<32x1xi1> to vector<32x1xi1>
    %58 = vector.broadcast %57 : vector<32x1xi1> to vector<32x64xi1>
    %59 = vector.broadcast %cst_31 : f32 to vector<32x64xf32>
    %60 = arith.select %58, %54, %59 : vector<32x64xi1>, vector<32x64xf32>
    %61 = arith.truncf %60 : vector<32x64xf32> to vector<32x64xbf16>
    %c3_32 = arith.constant 3 : index
    %c0_33 = arith.constant 0 : index
    %c0_34 = arith.constant 0 : index
    %62 = vector.load %arg2[%c3_32, %c0_33, %c0_34] : memref<5x64x64xbf16, #tpu.memory_space<vmem>>, vector<1x64x64xbf16>
    %63 = vector.shape_cast %62 : vector<1x64x64xbf16> to vector<64x64xbf16>
    %cst_35 = arith.constant dense<0.000000e+00> : vector<32x64xf32>
    %64 = tpu.matmul %61, %63, %cst_35 {dimension_numbers = #tpu.dot_dimension_numbers<[1], [0], [0], [1], [0, 0, 1, 1], [], []>} : vector<32x64xbf16>, vector<64x64xbf16>, vector<32x64xf32> -> vector<32x64xf32>
    %65 = arith.addf %53, %64 : vector<32x64xf32>
    %c4 = arith.constant 4 : index
    %c0_36 = arith.constant 0 : index
    %66 = vector.load %arg7[%c4, %c0_36] : memref<36x64xf32, #tpu.memory_space<vmem>>, vector<32x64xf32>
    %c14_i32 = arith.constant 14 : i32
    %67 = vector.broadcast %c14_i32 : i32 to vector<32x1xi32>
    %68 = arith.cmpi slt, %16, %67 : vector<32x1xi32>
    %cst_37 = arith.constant 0.000000e+00 : f32
    %69 = vector.shape_cast %68 : vector<32x1xi1> to vector<32x1xi1>
    %70 = vector.broadcast %69 : vector<32x1xi1> to vector<32x64xi1>
    %71 = vector.broadcast %cst_37 : f32 to vector<32x64xf32>
    %72 = arith.select %70, %66, %71 : vector<32x64xi1>, vector<32x64xf32>
    %73 = arith.truncf %72 : vector<32x64xf32> to vector<32x64xbf16>
    %c4_38 = arith.constant 4 : index
    %c0_39 = arith.constant 0 : index
    %c0_40 = arith.constant 0 : index
    %74 = vector.load %arg2[%c4_38, %c0_39, %c0_40] : memref<5x64x64xbf16, #tpu.memory_space<vmem>>, vector<1x64x64xbf16>
    %75 = vector.shape_cast %74 : vector<1x64x64xbf16> to vector<64x64xbf16>
    %cst_41 = arith.constant dense<0.000000e+00> : vector<32x64xf32>
    %76 = tpu.matmul %73, %75, %cst_41 {dimension_numbers = #tpu.dot_dimension_numbers<[1], [0], [0], [1], [0, 0, 1, 1], [], []>} : vector<32x64xbf16>, vector<64x64xbf16>, vector<32x64xf32> -> vector<32x64xf32>
    %77 = arith.addf %65, %76 : vector<32x64xf32>
    %c0_42 = arith.constant 0 : index
    %c0_43 = arith.constant 0 : index
    %78 = vector.load %arg3[%c0_42, %c0_43] : memref<1x64xf32, #tpu.memory_space<vmem>>, vector<1x64xf32>
    %79 = vector.broadcast %78 : vector<1x64xf32> to vector<32x64xf32>
    %80 = arith.addf %77, %79 : vector<32x64xf32>
    %cst_44 = arith.constant 0.000000e+00 : f32
    %81 = vector.broadcast %cst_44 : f32 to vector<32x64xf32>
    %82 = arith.maximumf %80, %81 : vector<32x64xf32>
    %cst_45 = arith.constant 0.000000e+00 : f32
    %83 = vector.broadcast %cst_45 : f32 to vector<3x64xf32>
    %c0_46 = arith.constant 0 : index
    %c0_47 = arith.constant 0 : index
    %84 = vector.load %arg8[%c0_46, %c0_47] : memref<38x64xf32, #tpu.memory_space<vmem>>, vector<3x64xf32>
    tpu.vector_store %arg8[%c0_46, %c0_47], %83 {strides = array<i32>} : memref<38x64xf32, #tpu.memory_space<vmem>>, vector<3x64xf32>,
    %cst_48 = arith.constant 0.000000e+00 : f32
    %85 = vector.broadcast %cst_48 : f32 to vector<3x64xf32>
    %c35 = arith.constant 35 : index
    %c0_49 = arith.constant 0 : index
    %86 = vector.load %arg8[%c35, %c0_49] : memref<38x64xf32, #tpu.memory_space<vmem>>, vector<3x64xf32>
    tpu.vector_store %arg8[%c35, %c0_49], %85 {strides = array<i32>} : memref<38x64xf32, #tpu.memory_space<vmem>>, vector<3x64xf32>,
    %c3_50 = arith.constant 3 : index
    %c0_51 = arith.constant 0 : index
    %87 = vector.load %arg8[%c3_50, %c0_51] : memref<38x64xf32, #tpu.memory_space<vmem>>, vector<32x64xf32>
    tpu.vector_store %arg8[%c3_50, %c0_51], %82 {strides = array<i32>} : memref<38x64xf32, #tpu.memory_space<vmem>>, vector<32x64xf32>,
    %cst_52 = arith.constant 0.000000e+00 : f32
    %88 = vector.broadcast %cst_52 : f32 to vector<32x128xf32>
    %c0_53 = arith.constant 0 : index
    %c0_54 = arith.constant 0 : index
    %89 = vector.load %arg8[%c0_53, %c0_54] : memref<38x64xf32, #tpu.memory_space<vmem>>, vector<32x64xf32>
    %c3_i32 = arith.constant 3 : i32
    %90 = vector.broadcast %c3_i32 : i32 to vector<32x1xi32>
    %91 = arith.cmpi sge, %16, %90 : vector<32x1xi32>
    %cst_55 = arith.constant 0.000000e+00 : f32
    %92 = vector.shape_cast %91 : vector<32x1xi1> to vector<32x1xi1>
    %93 = vector.broadcast %92 : vector<32x1xi1> to vector<32x64xi1>
    %94 = vector.broadcast %cst_55 : f32 to vector<32x64xf32>
    %95 = arith.select %93, %89, %94 : vector<32x64xi1>, vector<32x64xf32>
    %96 = arith.truncf %95 : vector<32x64xf32> to vector<32x64xbf16>
    %c0_56 = arith.constant 0 : index
    %c0_57 = arith.constant 0 : index
    %c0_58 = arith.constant 0 : index
    %97 = vector.load %arg4[%c0_56, %c0_57, %c0_58] : memref<7x64x128xbf16, #tpu.memory_space<vmem>>, vector<1x64x128xbf16>
    %98 = vector.shape_cast %97 : vector<1x64x128xbf16> to vector<64x128xbf16>
    %cst_59 = arith.constant dense<0.000000e+00> : vector<32x128xf32>
    %99 = tpu.matmul %96, %98, %cst_59 {dimension_numbers = #tpu.dot_dimension_numbers<[1], [0], [0], [1], [0, 0, 1, 1], [], []>} : vector<32x64xbf16>, vector<64x128xbf16>, vector<32x128xf32> -> vector<32x128xf32>
    %100 = arith.addf %88, %99 : vector<32x128xf32>
    %c1_60 = arith.constant 1 : index
    %c0_61 = arith.constant 0 : index
    %101 = vector.load %arg8[%c1_60, %c0_61] : memref<38x64xf32, #tpu.memory_space<vmem>>, vector<32x64xf32>
    %c2_i32_62 = arith.constant 2 : i32
    %102 = vector.broadcast %c2_i32_62 : i32 to vector<32x1xi32>
    %103 = arith.cmpi sge, %16, %102 : vector<32x1xi32>
    %cst_63 = arith.constant 0.000000e+00 : f32
    %104 = vector.shape_cast %103 : vector<32x1xi1> to vector<32x1xi1>
    %105 = vector.broadcast %104 : vector<32x1xi1> to vector<32x64xi1>
    %106 = vector.broadcast %cst_63 : f32 to vector<32x64xf32>
    %107 = arith.select %105, %101, %106 : vector<32x64xi1>, vector<32x64xf32>
    %108 = arith.truncf %107 : vector<32x64xf32> to vector<32x64xbf16>
    %c1_64 = arith.constant 1 : index
    %c0_65 = arith.constant 0 : index
    %c0_66 = arith.constant 0 : index
    %109 = vector.load %arg4[%c1_64, %c0_65, %c0_66] : memref<7x64x128xbf16, #tpu.memory_space<vmem>>, vector<1x64x128xbf16>
    %110 = vector.shape_cast %109 : vector<1x64x128xbf16> to vector<64x128xbf16>
    %cst_67 = arith.constant dense<0.000000e+00> : vector<32x128xf32>
    %111 = tpu.matmul %108, %110, %cst_67 {dimension_numbers = #tpu.dot_dimension_numbers<[1], [0], [0], [1], [0, 0, 1, 1], [], []>} : vector<32x64xbf16>, vector<64x128xbf16>, vector<32x128xf32> -> vector<32x128xf32>
    %112 = arith.addf %100, %111 : vector<32x128xf32>
    %c2_68 = arith.constant 2 : index
    %c0_69 = arith.constant 0 : index
    %113 = vector.load %arg8[%c2_68, %c0_69] : memref<38x64xf32, #tpu.memory_space<vmem>>, vector<32x64xf32>
    %c1_i32_70 = arith.constant 1 : i32
    %114 = vector.broadcast %c1_i32_70 : i32 to vector<32x1xi32>
    %115 = arith.cmpi sge, %16, %114 : vector<32x1xi32>
    %cst_71 = arith.constant 0.000000e+00 : f32
    %116 = vector.shape_cast %115 : vector<32x1xi1> to vector<32x1xi1>
    %117 = vector.broadcast %116 : vector<32x1xi1> to vector<32x64xi1>
    %118 = vector.broadcast %cst_71 : f32 to vector<32x64xf32>
    %119 = arith.select %117, %113, %118 : vector<32x64xi1>, vector<32x64xf32>
    %120 = arith.truncf %119 : vector<32x64xf32> to vector<32x64xbf16>
    %c2_72 = arith.constant 2 : index
    %c0_73 = arith.constant 0 : index
    %c0_74 = arith.constant 0 : index
    %121 = vector.load %arg4[%c2_72, %c0_73, %c0_74] : memref<7x64x128xbf16, #tpu.memory_space<vmem>>, vector<1x64x128xbf16>
    %122 = vector.shape_cast %121 : vector<1x64x128xbf16> to vector<64x128xbf16>
    %cst_75 = arith.constant dense<0.000000e+00> : vector<32x128xf32>
    %123 = tpu.matmul %120, %122, %cst_75 {dimension_numbers = #tpu.dot_dimension_numbers<[1], [0], [0], [1], [0, 0, 1, 1], [], []>} : vector<32x64xbf16>, vector<64x128xbf16>, vector<32x128xf32> -> vector<32x128xf32>
    %124 = arith.addf %112, %123 : vector<32x128xf32>
    %c3_76 = arith.constant 3 : index
    %c0_77 = arith.constant 0 : index
    %125 = vector.load %arg8[%c3_76, %c0_77] : memref<38x64xf32, #tpu.memory_space<vmem>>, vector<32x64xf32>
    %126 = arith.truncf %125 : vector<32x64xf32> to vector<32x64xbf16>
    %c3_78 = arith.constant 3 : index
    %c0_79 = arith.constant 0 : index
    %c0_80 = arith.constant 0 : index
    %127 = vector.load %arg4[%c3_78, %c0_79, %c0_80] : memref<7x64x128xbf16, #tpu.memory_space<vmem>>, vector<1x64x128xbf16>
    %128 = vector.shape_cast %127 : vector<1x64x128xbf16> to vector<64x128xbf16>
    %cst_81 = arith.constant dense<0.000000e+00> : vector<32x128xf32>
    %129 = tpu.matmul %126, %128, %cst_81 {dimension_numbers = #tpu.dot_dimension_numbers<[1], [0], [0], [1], [0, 0, 1, 1], [], []>} : vector<32x64xbf16>, vector<64x128xbf16>, vector<32x128xf32> -> vector<32x128xf32>
    %130 = arith.addf %124, %129 : vector<32x128xf32>
    %c4_82 = arith.constant 4 : index
    %c0_83 = arith.constant 0 : index
    %131 = vector.load %arg8[%c4_82, %c0_83] : memref<38x64xf32, #tpu.memory_space<vmem>>, vector<32x64xf32>
    %c15_i32_84 = arith.constant 15 : i32
    %132 = vector.broadcast %c15_i32_84 : i32 to vector<32x1xi32>
    %133 = arith.cmpi slt, %16, %132 : vector<32x1xi32>
    %cst_85 = arith.constant 0.000000e+00 : f32
    %134 = vector.shape_cast %133 : vector<32x1xi1> to vector<32x1xi1>
    %135 = vector.broadcast %134 : vector<32x1xi1> to vector<32x64xi1>
    %136 = vector.broadcast %cst_85 : f32 to vector<32x64xf32>
    %137 = arith.select %135, %131, %136 : vector<32x64xi1>, vector<32x64xf32>
    %138 = arith.truncf %137 : vector<32x64xf32> to vector<32x64xbf16>
    %c4_86 = arith.constant 4 : index
    %c0_87 = arith.constant 0 : index
    %c0_88 = arith.constant 0 : index
    %139 = vector.load %arg4[%c4_86, %c0_87, %c0_88] : memref<7x64x128xbf16, #tpu.memory_space<vmem>>, vector<1x64x128xbf16>
    %140 = vector.shape_cast %139 : vector<1x64x128xbf16> to vector<64x128xbf16>
    %cst_89 = arith.constant dense<0.000000e+00> : vector<32x128xf32>
    %141 = tpu.matmul %138, %140, %cst_89 {dimension_numbers = #tpu.dot_dimension_numbers<[1], [0], [0], [1], [0, 0, 1, 1], [], []>} : vector<32x64xbf16>, vector<64x128xbf16>, vector<32x128xf32> -> vector<32x128xf32>
    %142 = arith.addf %130, %141 : vector<32x128xf32>
    %c5 = arith.constant 5 : index
    %c0_90 = arith.constant 0 : index
    %143 = vector.load %arg8[%c5, %c0_90] : memref<38x64xf32, #tpu.memory_space<vmem>>, vector<32x64xf32>
    %c14_i32_91 = arith.constant 14 : i32
    %144 = vector.broadcast %c14_i32_91 : i32 to vector<32x1xi32>
    %145 = arith.cmpi slt, %16, %144 : vector<32x1xi32>
    %cst_92 = arith.constant 0.000000e+00 : f32
    %146 = vector.shape_cast %145 : vector<32x1xi1> to vector<32x1xi1>
    %147 = vector.broadcast %146 : vector<32x1xi1> to vector<32x64xi1>
    %148 = vector.broadcast %cst_92 : f32 to vector<32x64xf32>
    %149 = arith.select %147, %143, %148 : vector<32x64xi1>, vector<32x64xf32>
    %150 = arith.truncf %149 : vector<32x64xf32> to vector<32x64xbf16>
    %c5_93 = arith.constant 5 : index
    %c0_94 = arith.constant 0 : index
    %c0_95 = arith.constant 0 : index
    %151 = vector.load %arg4[%c5_93, %c0_94, %c0_95] : memref<7x64x128xbf16, #tpu.memory_space<vmem>>, vector<1x64x128xbf16>
    %152 = vector.shape_cast %151 : vector<1x64x128xbf16> to vector<64x128xbf16>
    %cst_96 = arith.constant dense<0.000000e+00> : vector<32x128xf32>
    %153 = tpu.matmul %150, %152, %cst_96 {dimension_numbers = #tpu.dot_dimension_numbers<[1], [0], [0], [1], [0, 0, 1, 1], [], []>} : vector<32x64xbf16>, vector<64x128xbf16>, vector<32x128xf32> -> vector<32x128xf32>
    %154 = arith.addf %142, %153 : vector<32x128xf32>
    %c6 = arith.constant 6 : index
    %c0_97 = arith.constant 0 : index
    %155 = vector.load %arg8[%c6, %c0_97] : memref<38x64xf32, #tpu.memory_space<vmem>>, vector<32x64xf32>
    %c13_i32 = arith.constant 13 : i32
    %156 = vector.broadcast %c13_i32 : i32 to vector<32x1xi32>
    %157 = arith.cmpi slt, %16, %156 : vector<32x1xi32>
    %cst_98 = arith.constant 0.000000e+00 : f32
    %158 = vector.shape_cast %157 : vector<32x1xi1> to vector<32x1xi1>
    %159 = vector.broadcast %158 : vector<32x1xi1> to vector<32x64xi1>
    %160 = vector.broadcast %cst_98 : f32 to vector<32x64xf32>
    %161 = arith.select %159, %155, %160 : vector<32x64xi1>, vector<32x64xf32>
    %162 = arith.truncf %161 : vector<32x64xf32> to vector<32x64xbf16>
    %c6_99 = arith.constant 6 : index
    %c0_100 = arith.constant 0 : index
    %c0_101 = arith.constant 0 : index
    %163 = vector.load %arg4[%c6_99, %c0_100, %c0_101] : memref<7x64x128xbf16, #tpu.memory_space<vmem>>, vector<1x64x128xbf16>
    %164 = vector.shape_cast %163 : vector<1x64x128xbf16> to vector<64x128xbf16>
    %cst_102 = arith.constant dense<0.000000e+00> : vector<32x128xf32>
    %165 = tpu.matmul %162, %164, %cst_102 {dimension_numbers = #tpu.dot_dimension_numbers<[1], [0], [0], [1], [0, 0, 1, 1], [], []>} : vector<32x64xbf16>, vector<64x128xbf16>, vector<32x128xf32> -> vector<32x128xf32>
    %166 = arith.addf %154, %165 : vector<32x128xf32>
    %c0_103 = arith.constant 0 : index
    %c0_104 = arith.constant 0 : index
    %167 = vector.load %arg5[%c0_103, %c0_104] : memref<1x128xf32, #tpu.memory_space<vmem>>, vector<1x128xf32>
    %168 = vector.broadcast %167 : vector<1x128xf32> to vector<32x128xf32>
    %169 = arith.addf %166, %168 : vector<32x128xf32>
    %c0_105 = arith.constant 0 : index
    %c0_106 = arith.constant 0 : index
    %170 = vector.load %arg6[%c0_105, %c0_106] : memref<32x128xf32, #tpu.memory_space<vmem>>, vector<32x128xf32>
    tpu.vector_store %arg6[%c0_105, %c0_106], %169 {strides = array<i32>} : memref<32x128xf32, #tpu.memory_space<vmem>>, vector<32x128xf32>,
    return
  }
  func.func @transform_0(%arg0: i32) -> (i32, i32) {
    %c0_i32 = arith.constant 0 : i32
    %c0_i32_0 = arith.constant 0 : i32
    return %arg0, %c0_i32 : i32, i32
  }
  func.func @transform_1(%arg0: i32) -> (i32, i32, i32) {
    %c0_i32 = arith.constant 0 : i32
    %c0_i32_0 = arith.constant 0 : i32
    %c0_i32_1 = arith.constant 0 : i32
    %c0_i32_2 = arith.constant 0 : i32
    return %c0_i32, %c0_i32_0, %c0_i32_1 : i32, i32, i32
  }
  func.func @transform_2(%arg0: i32) -> (i32, i32) {
    %c0_i32 = arith.constant 0 : i32
    %c0_i32_0 = arith.constant 0 : i32
    %c0_i32_1 = arith.constant 0 : i32
    return %c0_i32, %c0_i32_0 : i32, i32
  }
  func.func @transform_3(%arg0: i32) -> (i32, i32, i32) {
    %c0_i32 = arith.constant 0 : i32
    %c0_i32_0 = arith.constant 0 : i32
    %c0_i32_1 = arith.constant 0 : i32
    %c0_i32_2 = arith.constant 0 : i32
    return %c0_i32, %c0_i32_0, %c0_i32_1 : i32, i32, i32
  }
  func.func @transform_4(%arg0: i32) -> (i32, i32) {
    %c0_i32 = arith.constant 0 : i32
    %c0_i32_0 = arith.constant 0 : i32
    %c0_i32_1 = arith.constant 0 : i32
    return %c0_i32, %c0_i32_0 : i32, i32
  }
  func.func @transform_5(%arg0: i32) -> (i32, i32) {
    %c0_i32 = arith.constant 0 : i32
    %c0_i32_0 = arith.constant 0 : i32
    return %arg0, %c0_i32 : i32, i32
  }
}

</mosaic_0001>

<llo_original>
// kernel: embedding_conv_reducer_forward.1
$region0: #{embedding_conv_reducer_forward.1}
  #allocation0 [shape = 'u32[]', space=smem, size = 0x4, offset = 0x4, fixed_abs, tag = 'smem constant byte address 0x4 - core index']
  #allocation1 [shape = 'u32[144,128]{1,0:T(1,128)}', space=vmem, size = 0x12000, scoped, tag = 'internal scratch']
  #allocation2 [shape = 'f32[36,64]{1,0:T(8,128)}', space=vmem, size = 0x5000, scoped, tag = 'scratch operand']
  #allocation3 [shape = 'f32[38,64]{1,0:T(8,128)}', space=vmem, size = 0x5000, scoped, tag = 'scratch operand']
  %s0 = inlined_call_operand.vmem [shape: f32[32,64], index: 0, kind: input, shape index: {}]
  %s1 = inlined_call_operand.vmem [shape: bf16[5,64,64], index: 1, kind: input, shape index: {}]
  %s2 = inlined_call_operand.vmem [shape: f32[1,64], index: 2, kind: input, shape index: {}]
  %s3 = inlined_call_operand.vmem [shape: bf16[7,64,128], index: 3, kind: input, shape index: {}]
  %s4 = inlined_call_operand.vmem [shape: f32[1,128], index: 4, kind: input, shape index: {}]
  %s5 = inlined_call_operand.vmem [shape: f32[32,128], index: 5, kind: output, shape index: {}]
  %s6 = sld [smem:[#allocation0]]
  $region30: #{embedding_conv_reducer_forward.1} parent=0
    _
  %s8 = ssub.s32 1, %s6
  %s9 = scalar_select 0, %s8, %s6
  // Predicated region
  $region2: #{embedding_conv_reducer_forward.1} parent=0 // pred_check
    _
  $region3: #{embedding_conv_reducer_forward.1} parent=0 // pred_check_branch
    %11 = sbr.rel (0) target = $region5
  $region4: #{embedding_conv_reducer_forward.1} parent=0 // pred_region
    _
  $region5: #{embedding_conv_reducer_forward.1} parent=0 // pred_fallthru
    _
  // Predicated region
  $region6: #{embedding_conv_reducer_forward.1} parent=0 // pred_check
    _
  $region7: #{embedding_conv_reducer_forward.1} parent=0 // pred_check_branch
    %13 = sbr.rel (0) target = $region9
  $region8: #{embedding_conv_reducer_forward.1} parent=0 // pred_region
    _
  $region9: #{embedding_conv_reducer_forward.1} parent=0 // pred_fallthru
    _
  // Predicated region
  $region10: #{embedding_conv_reducer_forward.1} parent=0 // pred_check
    _
  $region11: #{embedding_conv_reducer_forward.1} parent=0 // pred_check_branch
    %15 = sbr.rel (0) target = $region13
  $region12: #{embedding_conv_reducer_forward.1} parent=0 // pred_region
    _
  $region13: #{embedding_conv_reducer_forward.1} parent=0 // pred_fallthru
    _
  // Predicated region
  $region14: #{embedding_conv_reducer_forward.1} parent=0 // pred_check
    _
  $region15: #{embedding_conv_reducer_forward.1} parent=0 // pred_check_branch
    %17 = sbr.rel (0) target = $region17
  $region16: #{embedding_conv_reducer_forward.1} parent=0 // pred_region
    _
  $region17: #{embedding_conv_reducer_forward.1} parent=0 // pred_fallthru
    _
  // Predicated region
  $region18: #{embedding_conv_reducer_forward.1} parent=0 // pred_check
    _
  $region19: #{embedding_conv_reducer_forward.1} parent=0 // pred_check_branch
    %19 = sbr.rel (0) target = $region21
  $region20: #{embedding_conv_reducer_forward.1} parent=0 // pred_region
    _
  $region21: #{embedding_conv_reducer_forward.1} parent=0 // pred_fallthru
    _
  %v21 = vlaneseq
  %v22 = vshrl.u32 %v21, 7
  %v23 = vadd.s32 %v22, 8
  %v24 = vadd.s32 %v22, 16
  %v25 = vadd.s32 %v22, 24
  %vm26 = vcmp.lt.s32.totalorder %v22, 0
  %v27 = vsub.s32 0, %v22
  %v28 = vsel %vm26, %v27, %v22
  %v29 = vshrl.u32 %v28, 4
  %v30 = vand.u32 %v28, 15
  %v31 = vsub.s32 0, %v30
  %v32 = vsel %vm26, %v31, %v30
  %vm33 = vcmp.lt.s32.totalorder %v23, 0
  %v34 = vsub.s32 0, %v23
  %v35 = vsel %vm33, %v34, %v23
  %v36 = vshrl.u32 %v35, 4
  %v37 = vand.u32 %v35, 15
  %v38 = vsub.s32 0, %v37
  %v39 = vsel %vm33, %v38, %v37
  %vm40 = vcmp.lt.s32.totalorder %v24, 0
  %v41 = vsub.s32 0, %v24
  %v42 = vsel %vm40, %v41, %v24
  %v43 = vshrl.u32 %v42, 4
  %v44 = vand.u32 %v42, 15
  %v45 = vsub.s32 0, %v44
  %v46 = vsel %vm40, %v45, %v44
  %vm47 = vcmp.lt.s32.totalorder %v25, 0
  %v48 = vsub.s32 0, %v25
  %v49 = vsel %vm47, %v48, %v25
  %v50 = vshrl.u32 %v49, 4
  %v51 = vand.u32 %v49, 15
  %v52 = vsub.s32 0, %v51
  %v53 = vsel %vm47, %v52, %v51
  %vm54 = vcmp.ne.s32.totalorder %v32, 0
  %vm55 = vcmp.ne.s32.totalorder %v39, 0
  %vm56 = vcmp.ne.s32.totalorder %v46, 0
  %vm57 = vcmp.ne.s32.totalorder %v53, 0
  %vm58 = vcmp.lt.s32.totalorder %v32, 0
  %vm59 = vcmp.lt.s32.totalorder %v39, 0
  %vm60 = vcmp.lt.s32.totalorder %v46, 0
  %vm61 = vcmp.lt.s32.totalorder %v53, 0
  %vm62 = vmand %vm58, %vm54
  %vm63 = vmand %vm59, %vm55
  %vm64 = vmand %vm60, %vm56
  %vm65 = vmand %vm61, %vm57
  %v66 = vadd.s32 %v32, 16
  %v67 = vadd.s32 %v39, 16
  %v68 = vadd.s32 %v46, 16
  %v69 = vadd.s32 %v53, 16
  %v70 = vsel %vm62, %v66, %v32
  %v71 = vsel %vm63, %v67, %v39
  %v72 = vsel %vm64, %v68, %v46
  %v73 = vsel %vm65, %v69, %v53
  %vm74 = vcmask 517120
  %75 = vst.msk [vmem:[#allocation2] sm:$0x3] %vm74, 0.0
  %76 = vst.msk [vmem:[#allocation2 + $0x22] sm:$0x3] %vm74, 0.0
  %v77 = vld [vmem:[%s0] sm:$0xff]
  %v78 = vld [vmem:[%s0 + $0x8] sm:$0xff]
  %v79 = vld [vmem:[%s0 + $0x10] sm:$0xff]
  %v80 = vld [vmem:[%s0 + $0x18] sm:$0xff]
  %vm81 = vcmask 523264
  %82 = vst.msk [vmem:[#allocation2 + $0x2] sm:$0xff] %vm81, %v77
  %83 = vst.msk [vmem:[#allocation2 + $0xa] sm:$0xff] %vm81, %v78
  %84 = vst.msk [vmem:[#allocation2 + $0x12] sm:$0xff] %vm81, %v79
  %85 = vst.msk [vmem:[#allocation2 + $0x1a] sm:$0xff] %vm81, %v80
  %v86 = vld [vmem:[#allocation2] sm:$0xff]
  %v87 = vld [vmem:[#allocation2 + $0x8] sm:$0xff]
  %v88 = vld [vmem:[#allocation2 + $0x10] sm:$0xff]
  %v89 = vld [vmem:[#allocation2 + $0x18] sm:$0xff]
  %vm90 = vcmp.ge.s32.totalorder %v70, 2
  %vm91 = vcmp.ge.s32.totalorder %v71, 2
  %vm92 = vcmp.ge.s32.totalorder %v72, 2
  %vm93 = vcmp.ge.s32.totalorder %v73, 2
  %v94 = vsel %vm90, 1, 0
  %v95 = vsel %vm91, 1, 0
  %v96 = vsel %vm92, 1, 0
  %v97 = vsel %vm93, 1, 0
  %vm98 = vcmp.eq.s32.totalorder %v94, 1
  %vm99 = vcmp.eq.s32.totalorder %v95, 1
  %vm100 = vcmp.eq.s32.totalorder %v96, 1
  %vm101 = vcmp.eq.s32.totalorder %v97, 1
  %v102 = vsel %vm98, %v86, 0.0
  %v103 = vsel %vm99, %v87, 0.0
  %v104 = vsel %vm100, %v88, 0.0
  %v105 = vsel %vm101, %v89, 0.0
  %v106 = vpack.c.bf16 %v103, %v102
  %v107 = vpack.c.bf16 %v105, %v104
  %v108 = vld [vmem:[%s1] sm:$0xf]
  %v109 = vld [vmem:[%s1 + $0x4] sm:$0xf]
  %v110 = vld [vmem:[%s1 + $0x8] sm:$0xf]
  %v111 = vld [vmem:[%s1 + $0xc] sm:$0xf]
  %v112 = vld [vmem:[%s1 + $0x10] sm:$0xf]
  %v113 = vld [vmem:[%s1 + $0x14] sm:$0xf]
  %v114 = vld [vmem:[%s1 + $0x18] sm:$0xf]
  %v115 = vld [vmem:[%s1 + $0x1c] sm:$0xf]
  %v116 = vld [vmem:[#allocation2 + $0x1] sm:$0xff]
  %v117 = vld [vmem:[#allocation2 + $0x9] sm:$0xff]
  %v118 = vld [vmem:[#allocation2 + $0x11] sm:$0xff]
  %v119 = vld [vmem:[#allocation2 + $0x19] sm:$0xff]
  %vm120 = vcmp.ge.s32.totalorder %v70, 1
  %vm121 = vcmp.ge.s32.totalorder %v71, 1
  %vm122 = vcmp.ge.s32.totalorder %v72, 1
  %vm123 = vcmp.ge.s32.totalorder %v73, 1
  %v124 = vsel %vm120, 1, 0
  %v125 = vsel %vm121, 1, 0
  %v126 = vsel %vm122, 1, 0
  %v127 = vsel %vm123, 1, 0
  %vm128 = vcmp.eq.s32.totalorder %v124, 1
  %vm129 = vcmp.eq.s32.totalorder %v125, 1
  %vm130 = vcmp.eq.s32.totalorder %v126, 1
  %vm131 = vcmp.eq.s32.totalorder %v127, 1
  %v132 = vsel %vm128, %v116, 0.0
  %v133 = vsel %vm129, %v117, 0.0
  %v134 = vsel %vm130, %v118, 0.0
  %v135 = vsel %vm131, %v119, 0.0
  %v136 = vpack.c.bf16 %v133, %v132
  %v137 = vpack.c.bf16 %v135, %v134
  %s138 = scalar_lea.vmem %s1, 32
  %v139 = vld [vmem:[%s138] sm:$0xf]
  %v140 = vld [vmem:[%s138 + $0x4] sm:$0xf]
  %v141 = vld [vmem:[%s138 + $0x8] sm:$0xf]
  %v142 = vld [vmem:[%s138 + $0xc] sm:$0xf]
  %v143 = vld [vmem:[%s138 + $0x10] sm:$0xf]
  %v144 = vld [vmem:[%s138 + $0x14] sm:$0xf]
  %v145 = vld [vmem:[%s138 + $0x18] sm:$0xf]
  %v146 = vld [vmem:[%s138 + $0x1c] sm:$0xf]
  %v155 = vunpack.c.l.b16 %v139
  %v156 = vunpack.c.l.b16 %v140
  %v157 = vunpack.c.l.b16 %v141
  %v158 = vunpack.c.l.b16 %v142
  %v159 = vunpack.c.l.b16 %v143
  %v160 = vunpack.c.l.b16 %v144
  %v161 = vunpack.c.l.b16 %v145
  %v162 = vunpack.c.l.b16 %v146
  %v163 = vpack.c.b16 %v156, %v155
  %v164 = vpack.c.b16 %v158, %v157
  %v165 = vpack.c.b16 %v160, %v159
  %v166 = vpack.c.b16 %v162, %v161
  %v172 = vsel %vm81, %v136, 0
  %v175 = vsel %vm81, %v137, 0
  %177 = vmatprep.subr.bf16.mxu0 0
  %178 = vmatpush1.bf16.msra.mxu0 %v163
  %179 = vmatprep.subr.bf16.mxu0 0
  %180 = vmatpush1.bf16.msra.mxu0 %v164
  %181 = vmatprep.subr.bf16.mxu0 0
  %182 = vmatpush1.bf16.msra.mxu0 %v165
  %183 = vmatprep.subr.bf16.mxu0 0
  %184 = vmatpush1.bf16.msra.mxu0 %v166
  %185 = vmatprep.subr.bf16.mxu0 0
  %186 = vmatpush1.bf16.msra.mxu0 0
  %187 = vmatprep.subr.bf16.mxu0 0
  %188 = vmatpush1.bf16.msra.mxu0 0
  %189 = vmatprep.subr.bf16.mxu0 0
  %190 = vmatpush1.bf16.msra.mxu0 0
  %191 = vmatprep.subr.bf16.mxu0 0
  %192 = vmatpush1.bf16.msra.mxu0 0
  %193 = vmatprep.subr.bf16.mxu0 0
  %194 = vmatpush1.bf16.msra.mxu0 0
  %195 = vmatprep.subr.bf16.mxu0 0
  %196 = vmatpush1.bf16.msra.mxu0 0
  %197 = vmatprep.subr.bf16.mxu0 0
  %198 = vmatpush1.bf16.msra.mxu0 0
  %199 = vmatprep.subr.bf16.mxu0 0
  %200 = vmatpush1.bf16.msra.mxu0 0
  %201 = vmatprep.subr.bf16.mxu0 0
  %202 = vmatpush1.bf16.msra.mxu0 0
  %203 = vmatprep.subr.bf16.mxu0 0
  %204 = vmatpush1.bf16.msra.mxu0 0
  %205 = vmatprep.subr.bf16.mxu0 0
  %206 = vmatpush1.bf16.msra.mxu0 0
  %207 = vmatprep.subr.bf16.mxu0 0
  %208 = vmatpush1.bf16.msra.mxu0 0
  %209 = vmatprep.mubr.bf16.mxu0 0
  %210 = vmatmul.mubr.bf16.gmra.mrb[0].mxu0 %v172
  %v211 = vpop.f32.mrb[0].mxu0
  %v212 = vadd.f32 0.0, %v211
  %v213 = vpop.f32.mrb[0].mxu0
  %v214 = vpop.f32.mrb[0].mxu0
  %v215 = vadd.f32 0.0, %v214
  %v216 = vpop.f32.mrb[0].mxu0
  %217 = vmatprep.mubr.bf16.mxu0 0
  %218 = vmatmul.mubr.bf16.gmra.mrb[0].mxu0 %v175
  %v219 = vpop.f32.mrb[0].mxu0
  %v220 = vadd.f32 0.0, %v219
  %v221 = vpop.f32.mrb[0].mxu0
  %v222 = vpop.f32.mrb[0].mxu0
  %v223 = vadd.f32 0.0, %v222
  %v224 = vpop.f32.mrb[0].mxu0
  %225 = vdwg.mxu0
  %v234 = vunpack.c.l.b16 %v108
  %v235 = vunpack.c.l.b16 %v109
  %v236 = vunpack.c.l.b16 %v110
  %v237 = vunpack.c.l.b16 %v111
  %v238 = vunpack.c.l.b16 %v112
  %v239 = vunpack.c.l.b16 %v113
  %v240 = vunpack.c.l.b16 %v114
  %v241 = vunpack.c.l.b16 %v115
  %v242 = vpack.c.b16 %v235, %v234
  %v243 = vpack.c.b16 %v237, %v236
  %v244 = vpack.c.b16 %v239, %v238
  %v245 = vpack.c.b16 %v241, %v240
  %v251 = vsel %vm81, %v106, 0
  %v254 = vsel %vm81, %v107, 0
  %256 = vmatprep.subr.bf16.mxu0 0
  %257 = vmatpush1.bf16.msra.mxu0 %v242
  %258 = vmatprep.subr.bf16.mxu0 0
  %259 = vmatpush1.bf16.msra.mxu0 %v243
  %260 = vmatprep.subr.bf16.mxu0 0
  %261 = vmatpush1.bf16.msra.mxu0 %v244
  %262 = vmatprep.subr.bf16.mxu0 0
  %263 = vmatpush1.bf16.msra.mxu0 %v245
  %264 = vmatprep.subr.bf16.mxu0 0
  %265 = vmatpush1.bf16.msra.mxu0 0
  %266 = vmatprep.subr.bf16.mxu0 0
  %267 = vmatpush1.bf16.msra.mxu0 0
  %268 = vmatprep.subr.bf16.mxu0 0
  %269 = vmatpush1.bf16.msra.mxu0 0
  %270 = vmatprep.subr.bf16.mxu0 0
  %271 = vmatpush1.bf16.msra.mxu0 0
  %272 = vmatprep.subr.bf16.mxu0 0
  %273 = vmatpush1.bf16.msra.mxu0 0
  %274 = vmatprep.subr.bf16.mxu0 0
  %275 = vmatpush1.bf16.msra.mxu0 0
  %276 = vmatprep.subr.bf16.mxu0 0
  %277 = vmatpush1.bf16.msra.mxu0 0
  %278 = vmatprep.subr.bf16.mxu0 0
  %279 = vmatpush1.bf16.msra.mxu0 0
  %280 = vmatprep.subr.bf16.mxu0 0
  %281 = vmatpush1.bf16.msra.mxu0 0
  %282 = vmatprep.subr.bf16.mxu0 0
  %283 = vmatpush1.bf16.msra.mxu0 0
  %284 = vmatprep.subr.bf16.mxu0 0
  %285 = vmatpush1.bf16.msra.mxu0 0
  %286 = vmatprep.subr.bf16.mxu0 0
  %287 = vmatpush1.bf16.msra.mxu0 0
  %288 = vmatprep.mubr.bf16.mxu0 0
  %289 = vmatmul.mubr.bf16.gmra.mrb[0].mxu0 %v251
  %v290 = vpop.f32.mrb[0].mxu0
  %v291 = vadd.f32 %v212, %v290
  %v292 = vpop.f32.mrb[0].mxu0
  %v293 = vpop.f32.mrb[0].mxu0
  %v294 = vadd.f32 %v215, %v293
  %v295 = vpop.f32.mrb[0].mxu0
  %296 = vmatprep.mubr.bf16.mxu0 0
  %297 = vmatmul.mubr.bf16.gmra.mrb[0].mxu0 %v254
  %v298 = vpop.f32.mrb[0].mxu0
  %v299 = vadd.f32 %v220, %v298
  %v300 = vpop.f32.mrb[0].mxu0
  %v301 = vpop.f32.mrb[0].mxu0
  %v302 = vadd.f32 %v223, %v301
  %v303 = vpop.f32.mrb[0].mxu0
  %304 = vdwg.mxu0
  %v305 = vld [vmem:[#allocation2 + $0x2] sm:$0xff]
  %v306 = vld [vmem:[#allocation2 + $0xa] sm:$0xff]
  %v307 = vld [vmem:[#allocation2 + $0x12] sm:$0xff]
  %v308 = vld [vmem:[#allocation2 + $0x1a] sm:$0xff]
  %v309 = vpack.c.bf16 %v306, %v305
  %v310 = vpack.c.bf16 %v308, %v307
  %s311 = scalar_lea.vmem %s1, 64
  %v312 = vld [vmem:[%s311] sm:$0xf]
  %v313 = vld [vmem:[%s311 + $0x4] sm:$0xf]
  %v314 = vld [vmem:[%s311 + $0x8] sm:$0xf]
  %v315 = vld [vmem:[%s311 + $0xc] sm:$0xf]
  %v316 = vld [vmem:[%s311 + $0x10] sm:$0xf]
  %v317 = vld [vmem:[%s311 + $0x14] sm:$0xf]
  %v318 = vld [vmem:[%s311 + $0x18] sm:$0xf]
  %v319 = vld [vmem:[%s311 + $0x1c] sm:$0xf]
  %v328 = vunpack.c.l.b16 %v312
  %v329 = vunpack.c.l.b16 %v313
  %v330 = vunpack.c.l.b16 %v314
  %v331 = vunpack.c.l.b16 %v315
  %v332 = vunpack.c.l.b16 %v316
  %v333 = vunpack.c.l.b16 %v317
  %v334 = vunpack.c.l.b16 %v318
  %v335 = vunpack.c.l.b16 %v319
  %v336 = vpack.c.b16 %v329, %v328
  %v337 = vpack.c.b16 %v331, %v330
  %v338 = vpack.c.b16 %v333, %v332
  %v339 = vpack.c.b16 %v335, %v334
  %v345 = vsel %vm81, %v309, 0
  %v348 = vsel %vm81, %v310, 0
  %350 = vmatprep.subr.bf16.mxu0 0
  %351 = vmatpush1.bf16.msra.mxu0 %v336
  %352 = vmatprep.subr.bf16.mxu0 0
  %353 = vmatpush1.bf16.msra.mxu0 %v337
  %354 = vmatprep.subr.bf16.mxu0 0
  %355 = vmatpush1.bf16.msra.mxu0 %v338
  %356 = vmatprep.subr.bf16.mxu0 0
  %357 = vmatpush1.bf16.msra.mxu0 %v339
  %358 = vmatprep.subr.bf16.mxu0 0
  %359 = vmatpush1.bf16.msra.mxu0 0
  %360 = vmatprep.subr.bf16.mxu0 0
  %361 = vmatpush1.bf16.msra.mxu0 0
  %362 = vmatprep.subr.bf16.mxu0 0
  %363 = vmatpush1.bf16.msra.mxu0 0
  %364 = vmatprep.subr.bf16.mxu0 0
  %365 = vmatpush1.bf16.msra.mxu0 0
  %366 = vmatprep.subr.bf16.mxu0 0
  %367 = vmatpush1.bf16.msra.mxu0 0
  %368 = vmatprep.subr.bf16.mxu0 0
  %369 = vmatpush1.bf16.msra.mxu0 0
  %370 = vmatprep.subr.bf16.mxu0 0
  %371 = vmatpush1.bf16.msra.mxu0 0
  %372 = vmatprep.subr.bf16.mxu0 0
  %373 = vmatpush1.bf16.msra.mxu0 0
  %374 = vmatprep.subr.bf16.mxu0 0
  %375 = vmatpush1.bf16.msra.mxu0 0
  %376 = vmatprep.subr.bf16.mxu0 0
  %377 = vmatpush1.bf16.msra.mxu0 0
  %378 = vmatprep.subr.bf16.mxu0 0
  %379 = vmatpush1.bf16.msra.mxu0 0
  %380 = vmatprep.subr.bf16.mxu0 0
  %381 = vmatpush1.bf16.msra.mxu0 0
  %382 = vmatprep.mubr.bf16.mxu0 0
  %383 = vmatmul.mubr.bf16.gmra.mrb[0].mxu0 %v345
  %v384 = vpop.f32.mrb[0].mxu0
  %v385 = vadd.f32 0.0, %v384
  %v386 = vpop.f32.mrb[0].mxu0
  %v387 = vpop.f32.mrb[0].mxu0
  %v388 = vadd.f32 0.0, %v387
  %v389 = vpop.f32.mrb[0].mxu0
  %390 = vmatprep.mubr.bf16.mxu0 0
  %391 = vmatmul.mubr.bf16.gmra.mrb[0].mxu0 %v348
  %v392 = vpop.f32.mrb[0].mxu0
  %v393 = vadd.f32 0.0, %v392
  %v394 = vpop.f32.mrb[0].mxu0
  %v395 = vpop.f32.mrb[0].mxu0
  %v396 = vadd.f32 0.0, %v395
  %v397 = vpop.f32.mrb[0].mxu0
  %398 = vdwg.mxu0
  %v399 = vadd.f32 %v291, %v385
  %v400 = vadd.f32 %v294, %v388
  %v401 = vadd.f32 %v299, %v393
  %v402 = vadd.f32 %v302, %v396
  %v403 = vld [vmem:[#allocation2 + $0x3] sm:$0xff]
  %v404 = vld [vmem:[#allocation2 + $0xb] sm:$0xff]
  %v405 = vld [vmem:[#allocation2 + $0x13] sm:$0xff]
  %v406 = vld [vmem:[#allocation2 + $0x1b] sm:$0xff]
  %vm407 = vcmp.lt.s32.totalorder %v70, 15
  %vm408 = vcmp.lt.s32.totalorder %v71, 15
  %vm409 = vcmp.lt.s32.totalorder %v72, 15
  %vm410 = vcmp.lt.s32.totalorder %v73, 15
  %v411 = vsel %vm407, 1, 0
  %v412 = vsel %vm408, 1, 0
  %v413 = vsel %vm409, 1, 0
  %v414 = vsel %vm410, 1, 0
  %vm415 = vcmp.eq.s32.totalorder %v411, 1
  %vm416 = vcmp.eq.s32.totalorder %v412, 1
  %vm417 = vcmp.eq.s32.totalorder %v413, 1
  %vm418 = vcmp.eq.s32.totalorder %v414, 1
  %v419 = vsel %vm415, %v403, 0.0
  %v420 = vsel %vm416, %v404, 0.0
  %v421 = vsel %vm417, %v405, 0.0
  %v422 = vsel %vm418, %v406, 0.0
  %v423 = vpack.c.bf16 %v420, %v419
  %v424 = vpack.c.bf16 %v422, %v421
  %s425 = scalar_lea.vmem %s1, 96
  %v426 = vld [vmem:[%s425] sm:$0xf]
  %v427 = vld [vmem:[%s425 + $0x4] sm:$0xf]
  %v428 = vld [vmem:[%s425 + $0x8] sm:$0xf]
  %v429 = vld [vmem:[%s425 + $0xc] sm:$0xf]
  %v430 = vld [vmem:[%s425 + $0x10] sm:$0xf]
  %v431 = vld [vmem:[%s425 + $0x14] sm:$0xf]
  %v432 = vld [vmem:[%s425 + $0x18] sm:$0xf]
  %v433 = vld [vmem:[%s425 + $0x1c] sm:$0xf]
  %v442 = vunpack.c.l.b16 %v426
  %v443 = vunpack.c.l.b16 %v427
  %v444 = vunpack.c.l.b16 %v428
  %v445 = vunpack.c.l.b16 %v429
  %v446 = vunpack.c.l.b16 %v430
  %v447 = vunpack.c.l.b16 %v431
  %v448 = vunpack.c.l.b16 %v432
  %v449 = vunpack.c.l.b16 %v433
  %v450 = vpack.c.b16 %v443, %v442
  %v451 = vpack.c.b16 %v445, %v444
  %v452 = vpack.c.b16 %v447, %v446
  %v453 = vpack.c.b16 %v449, %v448
  %v459 = vsel %vm81, %v423, 0
  %v462 = vsel %vm81, %v424, 0
  %464 = vmatprep.subr.bf16.mxu0 0
  %465 = vmatpush1.bf16.msra.mxu0 %v450
  %466 = vmatprep.subr.bf16.mxu0 0
  %467 = vmatpush1.bf16.msra.mxu0 %v451
  %468 = vmatprep.subr.bf16.mxu0 0
  %469 = vmatpush1.bf16.msra.mxu0 %v452
  %470 = vmatprep.subr.bf16.mxu0 0
  %471 = vmatpush1.bf16.msra.mxu0 %v453
  %472 = vmatprep.subr.bf16.mxu0 0
  %473 = vmatpush1.bf16.msra.mxu0 0
  %474 = vmatprep.subr.bf16.mxu0 0
  %475 = vmatpush1.bf16.msra.mxu0 0
  %476 = vmatprep.subr.bf16.mxu0 0
  %477 = vmatpush1.bf16.msra.mxu0 0
  %478 = vmatprep.subr.bf16.mxu0 0
  %479 = vmatpush1.bf16.msra.mxu0 0
  %480 = vmatprep.subr.bf16.mxu0 0
  %481 = vmatpush1.bf16.msra.mxu0 0
  %482 = vmatprep.subr.bf16.mxu0 0
  %483 = vmatpush1.bf16.msra.mxu0 0
  %484 = vmatprep.subr.bf16.mxu0 0
  %485 = vmatpush1.bf16.msra.mxu0 0
  %486 = vmatprep.subr.bf16.mxu0 0
  %487 = vmatpush1.bf16.msra.mxu0 0
  %488 = vmatprep.subr.bf16.mxu0 0
  %489 = vmatpush1.bf16.msra.mxu0 0
  %490 = vmatprep.subr.bf16.mxu0 0
  %491 = vmatpush1.bf16.msra.mxu0 0
  %492 = vmatprep.subr.bf16.mxu0 0
  %493 = vmatpush1.bf16.msra.mxu0 0
  %494 = vmatprep.subr.bf16.mxu0 0
  %495 = vmatpush1.bf16.msra.mxu0 0
  %496 = vmatprep.mubr.bf16.mxu0 0
  %497 = vmatmul.mubr.bf16.gmra.mrb[0].mxu0 %v459
  %v498 = vpop.f32.mrb[0].mxu0
  %v499 = vadd.f32 0.0, %v498
  %v500 = vpop.f32.mrb[0].mxu0
  %v501 = vpop.f32.mrb[0].mxu0
  %v502 = vadd.f32 0.0, %v501
  %v503 = vpop.f32.mrb[0].mxu0
  %504 = vmatprep.mubr.bf16.mxu0 0
  %505 = vmatmul.mubr.bf16.gmra.mrb[0].mxu0 %v462
  %v506 = vpop.f32.mrb[0].mxu0
  %v507 = vadd.f32 0.0, %v506
  %v508 = vpop.f32.mrb[0].mxu0
  %v509 = vpop.f32.mrb[0].mxu0
  %v510 = vadd.f32 0.0, %v509
  %v511 = vpop.f32.mrb[0].mxu0
  %512 = vdwg.mxu0
  %v513 = vadd.f32 %v399, %v499
  %v514 = vadd.f32 %v400, %v502
  %v515 = vadd.f32 %v401, %v507
  %v516 = vadd.f32 %v402, %v510
  %v517 = vld [vmem:[#allocation2 + $0x4] sm:$0xff]
  %v518 = vld [vmem:[#allocation2 + $0xc] sm:$0xff]
  %v519 = vld [vmem:[#allocation2 + $0x14] sm:$0xff]
  %v520 = vld [vmem:[#allocation2 + $0x1c] sm:$0xff]
  %vm521 = vcmp.lt.s32.totalorder %v70, 14
  %vm522 = vcmp.lt.s32.totalorder %v71, 14
  %vm523 = vcmp.lt.s32.totalorder %v72, 14
  %vm524 = vcmp.lt.s32.totalorder %v73, 14
  %v525 = vsel %vm521, 1, 0
  %v526 = vsel %vm522, 1, 0
  %v527 = vsel %vm523, 1, 0
  %v528 = vsel %vm524, 1, 0
  %vm529 = vcmp.eq.s32.totalorder %v525, 1
  %vm530 = vcmp.eq.s32.totalorder %v526, 1
  %vm531 = vcmp.eq.s32.totalorder %v527, 1
  %vm532 = vcmp.eq.s32.totalorder %v528, 1
  %v533 = vsel %vm529, %v517, 0.0
  %v534 = vsel %vm530, %v518, 0.0
  %v535 = vsel %vm531, %v519, 0.0
  %v536 = vsel %vm532, %v520, 0.0
  %v537 = vpack.c.bf16 %v534, %v533
  %v538 = vpack.c.bf16 %v536, %v535
  %s539 = scalar_lea.vmem %s1, 128
  %v540 = vld [vmem:[%s539] sm:$0xf]
  %v541 = vld [vmem:[%s539 + $0x4] sm:$0xf]
  %v542 = vld [vmem:[%s539 + $0x8] sm:$0xf]
  %v543 = vld [vmem:[%s539 + $0xc] sm:$0xf]
  %v544 = vld [vmem:[%s539 + $0x10] sm:$0xf]
  %v545 = vld [vmem:[%s539 + $0x14] sm:$0xf]
  %v546 = vld [vmem:[%s539 + $0x18] sm:$0xf]
  %v547 = vld [vmem:[%s539 + $0x1c] sm:$0xf]
  %v556 = vunpack.c.l.b16 %v540
  %v557 = vunpack.c.l.b16 %v541
  %v558 = vunpack.c.l.b16 %v542
  %v559 = vunpack.c.l.b16 %v543
  %v560 = vunpack.c.l.b16 %v544
  %v561 = vunpack.c.l.b16 %v545
  %v562 = vunpack.c.l.b16 %v546
  %v563 = vunpack.c.l.b16 %v547
  %v564 = vpack.c.b16 %v557, %v556
  %v565 = vpack.c.b16 %v559, %v558
  %v566 = vpack.c.b16 %v561, %v560
  %v567 = vpack.c.b16 %v563, %v562
  %v573 = vsel %vm81, %v537, 0
  %v576 = vsel %vm81, %v538, 0
  %578 = vmatprep.subr.bf16.mxu0 0
  %579 = vmatpush1.bf16.msra.mxu0 %v564
  %580 = vmatprep.subr.bf16.mxu0 0
  %581 = vmatpush1.bf16.msra.mxu0 %v565
  %582 = vmatprep.subr.bf16.mxu0 0
  %583 = vmatpush1.bf16.msra.mxu0 %v566
  %584 = vmatprep.subr.bf16.mxu0 0
  %585 = vmatpush1.bf16.msra.mxu0 %v567
  %586 = vmatprep.subr.bf16.mxu0 0
  %587 = vmatpush1.bf16.msra.mxu0 0
  %588 = vmatprep.subr.bf16.mxu0 0
  %589 = vmatpush1.bf16.msra.mxu0 0
  %590 = vmatprep.subr.bf16.mxu0 0
  %591 = vmatpush1.bf16.msra.mxu0 0
  %592 = vmatprep.subr.bf16.mxu0 0
  %593 = vmatpush1.bf16.msra.mxu0 0
  %594 = vmatprep.subr.bf16.mxu0 0
  %595 = vmatpush1.bf16.msra.mxu0 0
  %596 = vmatprep.subr.bf16.mxu0 0
  %597 = vmatpush1.bf16.msra.mxu0 0
  %598 = vmatprep.subr.bf16.mxu0 0
  %599 = vmatpush1.bf16.msra.mxu0 0
  %600 = vmatprep.subr.bf16.mxu0 0
  %601 = vmatpush1.bf16.msra.mxu0 0
  %602 = vmatprep.subr.bf16.mxu0 0
  %603 = vmatpush1.bf16.msra.mxu0 0
  %604 = vmatprep.subr.bf16.mxu0 0
  %605 = vmatpush1.bf16.msra.mxu0 0
  %606 = vmatprep.subr.bf16.mxu0 0
  %607 = vmatpush1.bf16.msra.mxu0 0
  %608 = vmatprep.subr.bf16.mxu0 0
  %609 = vmatpush1.bf16.msra.mxu0 0
  %610 = vmatprep.mubr.bf16.mxu0 0
  %611 = vmatmul.mubr.bf16.gmra.mrb[0].mxu0 %v573
  %v612 = vpop.f32.mrb[0].mxu0
  %v613 = vadd.f32 0.0, %v612
  %v614 = vpop.f32.mrb[0].mxu0
  %v615 = vpop.f32.mrb[0].mxu0
  %v616 = vadd.f32 0.0, %v615
  %v617 = vpop.f32.mrb[0].mxu0
  %618 = vmatprep.mubr.bf16.mxu0 0
  %619 = vmatmul.mubr.bf16.gmra.mrb[0].mxu0 %v576
  %v620 = vpop.f32.mrb[0].mxu0
  %v621 = vadd.f32 0.0, %v620
  %v622 = vpop.f32.mrb[0].mxu0
  %v623 = vpop.f32.mrb[0].mxu0
  %v624 = vadd.f32 0.0, %v623
  %v625 = vpop.f32.mrb[0].mxu0
  %626 = vdwg.mxu0
  %v627 = vadd.f32 %v513, %v613
  %v628 = vadd.f32 %v514, %v616
  %v629 = vadd.f32 %v515, %v621
  %v630 = vadd.f32 %v516, %v624
  %v631 = vld [vmem:[%s2] sm:$0x1]
  %v633 = vlaneseq
  %v634 = vshrl.u32 %v633, 7
  %v635 = vsub.s32 0, %v634
  %v636 = vrot.slane %v631, %v635
  %v638 = vadd.f32 %v627, %v636
  %v639 = vadd.f32 %v628, %v636
  %v640 = vadd.f32 %v629, %v636
  %v641 = vadd.f32 %v630, %v636
  %v642 = vmax.f32 %v638, 0.0
  %v643 = vmax.f32 %v639, 0.0
  %v644 = vmax.f32 %v640, 0.0
  %v645 = vmax.f32 %v641, 0.0
  %vm646 = vcmask 518144
  %647 = vst.msk [vmem:[#allocation3] sm:$0x7] %vm646, 0.0
  %648 = vst.msk [vmem:[#allocation3 + $0x23] sm:$0x7] %vm646, 0.0
  %649 = vst.msk [vmem:[#allocation3 + $0x3] sm:$0xff] %vm81, %v642
  %650 = vst.msk [vmem:[#allocation3 + $0xb] sm:$0xff] %vm81, %v643
  %651 = vst.msk [vmem:[#allocation3 + $0x13] sm:$0xff] %vm81, %v644
  %652 = vst.msk [vmem:[#allocation3 + $0x1b] sm:$0xff] %vm81, %v645
  %v653 = vld [vmem:[#allocation3] sm:$0xff]
  %v654 = vld [vmem:[#allocation3 + $0x8] sm:$0xff]
  %v655 = vld [vmem:[#allocation3 + $0x10] sm:$0xff]
  %v656 = vld [vmem:[#allocation3 + $0x18] sm:$0xff]
  %vm657 = vcmp.ge.s32.totalorder %v70, 3
  %vm658 = vcmp.ge.s32.totalorder %v71, 3
  %vm659 = vcmp.ge.s32.totalorder %v72, 3
  %vm660 = vcmp.ge.s32.totalorder %v73, 3
  %v661 = vsel %vm657, 1, 0
  %v662 = vsel %vm658, 1, 0
  %v663 = vsel %vm659, 1, 0
  %v664 = vsel %vm660, 1, 0
  %vm665 = vcmp.eq.s32.totalorder %v661, 1
  %vm666 = vcmp.eq.s32.totalorder %v662, 1
  %vm667 = vcmp.eq.s32.totalorder %v663, 1
  %vm668 = vcmp.eq.s32.totalorder %v664, 1
  %v669 = vsel %vm665, %v653, 0.0
  %v670 = vsel %vm666, %v654, 0.0
  %v671 = vsel %vm667, %v655, 0.0
  %v672 = vsel %vm668, %v656, 0.0
  %v673 = vpack.c.bf16 %v670, %v669
  %v674 = vpack.c.bf16 %v672, %v671
  %v675 = vld [vmem:[%s3] sm:$0xf]
  %v676 = vld [vmem:[%s3 + $0x4] sm:$0xf]
  %v677 = vld [vmem:[%s3 + $0x8] sm:$0xf]
  %v678 = vld [vmem:[%s3 + $0xc] sm:$0xf]
  %v679 = vld [vmem:[%s3 + $0x10] sm:$0xf]
  %v680 = vld [vmem:[%s3 + $0x14] sm:$0xf]
  %v681 = vld [vmem:[%s3 + $0x18] sm:$0xf]
  %v682 = vld [vmem:[%s3 + $0x1c] sm:$0xf]
  %v683 = vld [vmem:[#allocation3 + $0x1] sm:$0xff]
  %v684 = vld [vmem:[#allocation3 + $0x9] sm:$0xff]
  %v685 = vld [vmem:[#allocation3 + $0x11] sm:$0xff]
  %v686 = vld [vmem:[#allocation3 + $0x19] sm:$0xff]
  %v687 = vsel %vm98, %v683, 0.0
  %v688 = vsel %vm99, %v684, 0.0
  %v689 = vsel %vm100, %v685, 0.0
  %v690 = vsel %vm101, %v686, 0.0
  %v691 = vpack.c.bf16 %v688, %v687
  %v692 = vpack.c.bf16 %v690, %v689
  %s693 = scalar_lea.vmem %s3, 32
  %v694 = vld [vmem:[%s693] sm:$0xf]
  %v695 = vld [vmem:[%s693 + $0x4] sm:$0xf]
  %v696 = vld [vmem:[%s693 + $0x8] sm:$0xf]
  %v697 = vld [vmem:[%s693 + $0xc] sm:$0xf]
  %v698 = vld [vmem:[%s693 + $0x10] sm:$0xf]
  %v699 = vld [vmem:[%s693 + $0x14] sm:$0xf]
  %v700 = vld [vmem:[%s693 + $0x18] sm:$0xf]
  %v701 = vld [vmem:[%s693 + $0x1c] sm:$0xf]
  %v710 = vunpack.c.l.b16 %v694
  %v711 = vunpack.c.l.b16 %v695
  %v712 = vunpack.c.l.b16 %v696
  %v713 = vunpack.c.l.b16 %v697
  %v714 = vunpack.c.l.b16 %v698
  %v715 = vunpack.c.l.b16 %v699
  %v716 = vunpack.c.l.b16 %v700
  %v717 = vunpack.c.l.b16 %v701
  %v718 = vpack.c.b16 %v711, %v710
  %v719 = vpack.c.b16 %v713, %v712
  %v720 = vpack.c.b16 %v715, %v714
  %v721 = vpack.c.b16 %v717, %v716
  %v727 = vsel %vm81, %v691, 0
  %v730 = vsel %vm81, %v692, 0
  %732 = vmatprep.subr.bf16.mxu0 0
  %733 = vmatpush1.bf16.msra.mxu0 %v718
  %734 = vmatprep.subr.bf16.mxu0 0
  %735 = vmatpush1.bf16.msra.mxu0 %v719
  %736 = vmatprep.subr.bf16.mxu0 0
  %737 = vmatpush1.bf16.msra.mxu0 %v720
  %738 = vmatprep.subr.bf16.mxu0 0
  %739 = vmatpush1.bf16.msra.mxu0 %v721
  %740 = vmatprep.subr.bf16.mxu0 0
  %741 = vmatpush1.bf16.msra.mxu0 0
  %742 = vmatprep.subr.bf16.mxu0 0
  %743 = vmatpush1.bf16.msra.mxu0 0
  %744 = vmatprep.subr.bf16.mxu0 0
  %745 = vmatpush1.bf16.msra.mxu0 0
  %746 = vmatprep.subr.bf16.mxu0 0
  %747 = vmatpush1.bf16.msra.mxu0 0
  %748 = vmatprep.subr.bf16.mxu0 0
  %749 = vmatpush1.bf16.msra.mxu0 0
  %750 = vmatprep.subr.bf16.mxu0 0
  %751 = vmatpush1.bf16.msra.mxu0 0
  %752 = vmatprep.subr.bf16.mxu0 0
  %753 = vmatpush1.bf16.msra.mxu0 0
  %754 = vmatprep.subr.bf16.mxu0 0
  %755 = vmatpush1.bf16.msra.mxu0 0
  %756 = vmatprep.subr.bf16.mxu0 0
  %757 = vmatpush1.bf16.msra.mxu0 0
  %758 = vmatprep.subr.bf16.mxu0 0
  %759 = vmatpush1.bf16.msra.mxu0 0
  %760 = vmatprep.subr.bf16.mxu0 0
  %761 = vmatpush1.bf16.msra.mxu0 0
  %762 = vmatprep.subr.bf16.mxu0 0
  %763 = vmatpush1.bf16.msra.mxu0 0
  %764 = vmatprep.mubr.bf16.mxu0 0
  %765 = vmatmul.mubr.bf16.gmra.mrb[0].mxu0 %v727
  %v766 = vpop.f32.mrb[0].mxu0
  %v767 = vadd.f32 0.0, %v766
  %v768 = vpop.f32.mrb[0].mxu0
  %v769 = vpop.f32.mrb[0].mxu0
  %v770 = vadd.f32 0.0, %v769
  %v771 = vpop.f32.mrb[0].mxu0
  %772 = vmatprep.mubr.bf16.mxu0 0
  %773 = vmatmul.mubr.bf16.gmra.mrb[0].mxu0 %v730
  %v774 = vpop.f32.mrb[0].mxu0
  %v775 = vadd.f32 0.0, %v774
  %v776 = vpop.f32.mrb[0].mxu0
  %v777 = vpop.f32.mrb[0].mxu0
  %v778 = vadd.f32 0.0, %v777
  %v779 = vpop.f32.mrb[0].mxu0
  %780 = vdwg.mxu0
  %v789 = vunpack.c.l.b16 %v675
  %v790 = vunpack.c.l.b16 %v676
  %v791 = vunpack.c.l.b16 %v677
  %v792 = vunpack.c.l.b16 %v678
  %v793 = vunpack.c.l.b16 %v679
  %v794 = vunpack.c.l.b16 %v680
  %v795 = vunpack.c.l.b16 %v681
  %v796 = vunpack.c.l.b16 %v682
  %v797 = vpack.c.b16 %v790, %v789
  %v798 = vpack.c.b16 %v792, %v791
  %v799 = vpack.c.b16 %v794, %v793
  %v800 = vpack.c.b16 %v796, %v795
  %v806 = vsel %vm81, %v673, 0
  %v809 = vsel %vm81, %v674, 0
  %811 = vmatprep.subr.bf16.mxu0 0
  %812 = vmatpush1.bf16.msra.mxu0 %v797
  %813 = vmatprep.subr.bf16.mxu0 0
  %814 = vmatpush1.bf16.msra.mxu0 %v798
  %815 = vmatprep.subr.bf16.mxu0 0
  %816 = vmatpush1.bf16.msra.mxu0 %v799
  %817 = vmatprep.subr.bf16.mxu0 0
  %818 = vmatpush1.bf16.msra.mxu0 %v800
  %819 = vmatprep.subr.bf16.mxu0 0
  %820 = vmatpush1.bf16.msra.mxu0 0
  %821 = vmatprep.subr.bf16.mxu0 0
  %822 = vmatpush1.bf16.msra.mxu0 0
  %823 = vmatprep.subr.bf16.mxu0 0
  %824 = vmatpush1.bf16.msra.mxu0 0
  %825 = vmatprep.subr.bf16.mxu0 0
  %826 = vmatpush1.bf16.msra.mxu0 0
  %827 = vmatprep.subr.bf16.mxu0 0
  %828 = vmatpush1.bf16.msra.mxu0 0
  %829 = vmatprep.subr.bf16.mxu0 0
  %830 = vmatpush1.bf16.msra.mxu0 0
  %831 = vmatprep.subr.bf16.mxu0 0
  %832 = vmatpush1.bf16.msra.mxu0 0
  %833 = vmatprep.subr.bf16.mxu0 0
  %834 = vmatpush1.bf16.msra.mxu0 0
  %835 = vmatprep.subr.bf16.mxu0 0
  %836 = vmatpush1.bf16.msra.mxu0 0
  %837 = vmatprep.subr.bf16.mxu0 0
  %838 = vmatpush1.bf16.msra.mxu0 0
  %839 = vmatprep.subr.bf16.mxu0 0
  %840 = vmatpush1.bf16.msra.mxu0 0
  %841 = vmatprep.subr.bf16.mxu0 0
  %842 = vmatpush1.bf16.msra.mxu0 0
  %843 = vmatprep.mubr.bf16.mxu0 0
  %844 = vmatmul.mubr.bf16.gmra.mrb[0].mxu0 %v806
  %v845 = vpop.f32.mrb[0].mxu0
  %v846 = vadd.f32 %v767, %v845
  %v847 = vpop.f32.mrb[0].mxu0
  %v848 = vpop.f32.mrb[0].mxu0
  %v849 = vadd.f32 %v770, %v848
  %v850 = vpop.f32.mrb[0].mxu0
  %851 = vmatprep.mubr.bf16.mxu0 0
  %852 = vmatmul.mubr.bf16.gmra.mrb[0].mxu0 %v809
  %v853 = vpop.f32.mrb[0].mxu0
  %v854 = vadd.f32 %v775, %v853
  %v855 = vpop.f32.mrb[0].mxu0
  %v856 = vpop.f32.mrb[0].mxu0
  %v857 = vadd.f32 %v778, %v856
  %v858 = vpop.f32.mrb[0].mxu0
  %859 = vdwg.mxu0
  %v860 = vld [vmem:[#allocation3 + $0x2] sm:$0xff]
  %v861 = vld [vmem:[#allocation3 + $0xa] sm:$0xff]
  %v862 = vld [vmem:[#allocation3 + $0x12] sm:$0xff]
  %v863 = vld [vmem:[#allocation3 + $0x1a] sm:$0xff]
  %v864 = vsel %vm128, %v860, 0.0
  %v865 = vsel %vm129, %v861, 0.0
  %v866 = vsel %vm130, %v862, 0.0
  %v867 = vsel %vm131, %v863, 0.0
  %v868 = vpack.c.bf16 %v865, %v864
  %v869 = vpack.c.bf16 %v867, %v866
  %s870 = scalar_lea.vmem %s3, 64
  %v871 = vld [vmem:[%s870] sm:$0xf]
  %v872 = vld [vmem:[%s870 + $0x4] sm:$0xf]
  %v873 = vld [vmem:[%s870 + $0x8] sm:$0xf]
  %v874 = vld [vmem:[%s870 + $0xc] sm:$0xf]
  %v875 = vld [vmem:[%s870 + $0x10] sm:$0xf]
  %v876 = vld [vmem:[%s870 + $0x14] sm:$0xf]
  %v877 = vld [vmem:[%s870 + $0x18] sm:$0xf]
  %v878 = vld [vmem:[%s870 + $0x1c] sm:$0xf]
  %v887 = vunpack.c.l.b16 %v871
  %v888 = vunpack.c.l.b16 %v872
  %v889 = vunpack.c.l.b16 %v873
  %v890 = vunpack.c.l.b16 %v874
  %v891 = vunpack.c.l.b16 %v875
  %v892 = vunpack.c.l.b16 %v876
  %v893 = vunpack.c.l.b16 %v877
  %v894 = vunpack.c.l.b16 %v878
  %v895 = vpack.c.b16 %v888, %v887
  %v896 = vpack.c.b16 %v890, %v889
  %v897 = vpack.c.b16 %v892, %v891
  %v898 = vpack.c.b16 %v894, %v893
  %v904 = vsel %vm81, %v868, 0
  %v907 = vsel %vm81, %v869, 0
  %909 = vmatprep.subr.bf16.mxu0 0
  %910 = vmatpush1.bf16.msra.mxu0 %v895
  %911 = vmatprep.subr.bf16.mxu0 0
  %912 = vmatpush1.bf16.msra.mxu0 %v896
  %913 = vmatprep.subr.bf16.mxu0 0
  %914 = vmatpush1.bf16.msra.mxu0 %v897
  %915 = vmatprep.subr.bf16.mxu0 0
  %916 = vmatpush1.bf16.msra.mxu0 %v898
  %917 = vmatprep.subr.bf16.mxu0 0
  %918 = vmatpush1.bf16.msra.mxu0 0
  %919 = vmatprep.subr.bf16.mxu0 0
  %920 = vmatpush1.bf16.msra.mxu0 0
  %921 = vmatprep.subr.bf16.mxu0 0
  %922 = vmatpush1.bf16.msra.mxu0 0
  %923 = vmatprep.subr.bf16.mxu0 0
  %924 = vmatpush1.bf16.msra.mxu0 0
  %925 = vmatprep.subr.bf16.mxu0 0
  %926 = vmatpush1.bf16.msra.mxu0 0
  %927 = vmatprep.subr.bf16.mxu0 0
  %928 = vmatpush1.bf16.msra.mxu0 0
  %929 = vmatprep.subr.bf16.mxu0 0
  %930 = vmatpush1.bf16.msra.mxu0 0
  %931 = vmatprep.subr.bf16.mxu0 0
  %932 = vmatpush1.bf16.msra.mxu0 0
  %933 = vmatprep.subr.bf16.mxu0 0
  %934 = vmatpush1.bf16.msra.mxu0 0
  %935 = vmatprep.subr.bf16.mxu0 0
  %936 = vmatpush1.bf16.msra.mxu0 0
  %937 = vmatprep.subr.bf16.mxu0 0
  %938 = vmatpush1.bf16.msra.mxu0 0
  %939 = vmatprep.subr.bf16.mxu0 0
  %940 = vmatpush1.bf16.msra.mxu0 0
  %941 = vmatprep.mubr.bf16.mxu0 0
  %942 = vmatmul.mubr.bf16.gmra.mrb[0].mxu0 %v904
  %v943 = vpop.f32.mrb[0].mxu0
  %v944 = vadd.f32 0.0, %v943
  %v945 = vpop.f32.mrb[0].mxu0
  %v946 = vpop.f32.mrb[0].mxu0
  %v947 = vadd.f32 0.0, %v946
  %v948 = vpop.f32.mrb[0].mxu0
  %949 = vmatprep.mubr.bf16.mxu0 0
  %950 = vmatmul.mubr.bf16.gmra.mrb[0].mxu0 %v907
  %v951 = vpop.f32.mrb[0].mxu0
  %v952 = vadd.f32 0.0, %v951
  %v953 = vpop.f32.mrb[0].mxu0
  %v954 = vpop.f32.mrb[0].mxu0
  %v955 = vadd.f32 0.0, %v954
  %v956 = vpop.f32.mrb[0].mxu0
  %957 = vdwg.mxu0
  %v958 = vadd.f32 %v846, %v944
  %v959 = vadd.f32 %v849, %v947
  %v960 = vadd.f32 %v854, %v952
  %v961 = vadd.f32 %v857, %v955
  %v962 = vld [vmem:[#allocation3 + $0x3] sm:$0xff]
  %v963 = vld [vmem:[#allocation3 + $0xb] sm:$0xff]
  %v964 = vld [vmem:[#allocation3 + $0x13] sm:$0xff]
  %v965 = vld [vmem:[#allocation3 + $0x1b] sm:$0xff]
  %v966 = vpack.c.bf16 %v963, %v962
  %v967 = vpack.c.bf16 %v965, %v964
  %s968 = scalar_lea.vmem %s3, 96
  %v969 = vld [vmem:[%s968] sm:$0xf]
  %v970 = vld [vmem:[%s968 + $0x4] sm:$0xf]
  %v971 = vld [vmem:[%s968 + $0x8] sm:$0xf]
  %v972 = vld [vmem:[%s968 + $0xc] sm:$0xf]
  %v973 = vld [vmem:[%s968 + $0x10] sm:$0xf]
  %v974 = vld [vmem:[%s968 + $0x14] sm:$0xf]
  %v975 = vld [vmem:[%s968 + $0x18] sm:$0xf]
  %v976 = vld [vmem:[%s968 + $0x1c] sm:$0xf]
  %v985 = vunpack.c.l.b16 %v969
  %v986 = vunpack.c.l.b16 %v970
  %v987 = vunpack.c.l.b16 %v971
  %v988 = vunpack.c.l.b16 %v972
  %v989 = vunpack.c.l.b16 %v973
  %v990 = vunpack.c.l.b16 %v974
  %v991 = vunpack.c.l.b16 %v975
  %v992 = vunpack.c.l.b16 %v976
  %v993 = vpack.c.b16 %v986, %v985
  %v994 = vpack.c.b16 %v988, %v987
  %v995 = vpack.c.b16 %v990, %v989
  %v996 = vpack.c.b16 %v992, %v991
  %v1002 = vsel %vm81, %v966, 0
  %v1005 = vsel %vm81, %v967, 0
  %1007 = vmatprep.subr.bf16.mxu0 0
  %1008 = vmatpush1.bf16.msra.mxu0 %v993
  %1009 = vmatprep.subr.bf16.mxu0 0
  %1010 = vmatpush1.bf16.msra.mxu0 %v994
  %1011 = vmatprep.subr.bf16.mxu0 0
  %1012 = vmatpush1.bf16.msra.mxu0 %v995
  %1013 = vmatprep.subr.bf16.mxu0 0
  %1014 = vmatpush1.bf16.msra.mxu0 %v996
  %1015 = vmatprep.subr.bf16.mxu0 0
  %1016 = vmatpush1.bf16.msra.mxu0 0
  %1017 = vmatprep.subr.bf16.mxu0 0
  %1018 = vmatpush1.bf16.msra.mxu0 0
  %1019 = vmatprep.subr.bf16.mxu0 0
  %1020 = vmatpush1.bf16.msra.mxu0 0
  %1021 = vmatprep.subr.bf16.mxu0 0
  %1022 = vmatpush1.bf16.msra.mxu0 0
  %1023 = vmatprep.subr.bf16.mxu0 0
  %1024 = vmatpush1.bf16.msra.mxu0 0
  %1025 = vmatprep.subr.bf16.mxu0 0
  %1026 = vmatpush1.bf16.msra.mxu0 0
  %1027 = vmatprep.subr.bf16.mxu0 0
  %1028 = vmatpush1.bf16.msra.mxu0 0
  %1029 = vmatprep.subr.bf16.mxu0 0
  %1030 = vmatpush1.bf16.msra.mxu0 0
  %1031 = vmatprep.subr.bf16.mxu0 0
  %1032 = vmatpush1.bf16.msra.mxu0 0
  %1033 = vmatprep.subr.bf16.mxu0 0
  %1034 = vmatpush1.bf16.msra.mxu0 0
  %1035 = vmatprep.subr.bf16.mxu0 0
  %1036 = vmatpush1.bf16.msra.mxu0 0
  %1037 = vmatprep.subr.bf16.mxu0 0
  %1038 = vmatpush1.bf16.msra.mxu0 0
  %1039 = vmatprep.mubr.bf16.mxu0 0
  %1040 = vmatmul.mubr.bf16.gmra.mrb[0].mxu0 %v1002
  %v1041 = vpop.f32.mrb[0].mxu0
  %v1042 = vadd.f32 0.0, %v1041
  %v1043 = vpop.f32.mrb[0].mxu0
  %v1044 = vpop.f32.mrb[0].mxu0
  %v1045 = vadd.f32 0.0, %v1044
  %v1046 = vpop.f32.mrb[0].mxu0
  %1047 = vmatprep.mubr.bf16.mxu0 0
  %1048 = vmatmul.mubr.bf16.gmra.mrb[0].mxu0 %v1005
  %v1049 = vpop.f32.mrb[0].mxu0
  %v1050 = vadd.f32 0.0, %v1049
  %v1051 = vpop.f32.mrb[0].mxu0
  %v1052 = vpop.f32.mrb[0].mxu0
  %v1053 = vadd.f32 0.0, %v1052
  %v1054 = vpop.f32.mrb[0].mxu0
  %1055 = vdwg.mxu0
  %v1056 = vadd.f32 %v958, %v1042
  %v1057 = vadd.f32 %v959, %v1045
  %v1058 = vadd.f32 %v960, %v1050
  %v1059 = vadd.f32 %v961, %v1053
  %v1060 = vld [vmem:[#allocation3 + $0x4] sm:$0xff]
  %v1061 = vld [vmem:[#allocation3 + $0xc] sm:$0xff]
  %v1062 = vld [vmem:[#allocation3 + $0x14] sm:$0xff]
  %v1063 = vld [vmem:[#allocation3 + $0x1c] sm:$0xff]
  %v1064 = vsel %vm415, %v1060, 0.0
  %v1065 = vsel %vm416, %v1061, 0.0
  %v1066 = vsel %vm417, %v1062, 0.0
  %v1067 = vsel %vm418, %v1063, 0.0
  %v1068 = vpack.c.bf16 %v1065, %v1064
  %v1069 = vpack.c.bf16 %v1067, %v1066
  %s1070 = scalar_lea.vmem %s3, 128
  %v1071 = vld [vmem:[%s1070] sm:$0xf]
  %v1072 = vld [vmem:[%s1070 + $0x4] sm:$0xf]
  %v1073 = vld [vmem:[%s1070 + $0x8] sm:$0xf]
  %v1074 = vld [vmem:[%s1070 + $0xc] sm:$0xf]
  %v1075 = vld [vmem:[%s1070 + $0x10] sm:$0xf]
  %v1076 = vld [vmem:[%s1070 + $0x14] sm:$0xf]
  %v1077 = vld [vmem:[%s1070 + $0x18] sm:$0xf]
  %v1078 = vld [vmem:[%s1070 + $0x1c] sm:$0xf]
  %v1087 = vunpack.c.l.b16 %v1071
  %v1088 = vunpack.c.l.b16 %v1072
  %v1089 = vunpack.c.l.b16 %v1073
  %v1090 = vunpack.c.l.b16 %v1074
  %v1091 = vunpack.c.l.b16 %v1075
  %v1092 = vunpack.c.l.b16 %v1076
  %v1093 = vunpack.c.l.b16 %v1077
  %v1094 = vunpack.c.l.b16 %v1078
  %v1095 = vpack.c.b16 %v1088, %v1087
  %v1096 = vpack.c.b16 %v1090, %v1089
  %v1097 = vpack.c.b16 %v1092, %v1091
  %v1098 = vpack.c.b16 %v1094, %v1093
  %v1104 = vsel %vm81, %v1068, 0
  %v1107 = vsel %vm81, %v1069, 0
  %1109 = vmatprep.subr.bf16.mxu0 0
  %1110 = vmatpush1.bf16.msra.mxu0 %v1095
  %1111 = vmatprep.subr.bf16.mxu0 0
  %1112 = vmatpush1.bf16.msra.mxu0 %v1096
  %1113 = vmatprep.subr.bf16.mxu0 0
  %1114 = vmatpush1.bf16.msra.mxu0 %v1097
  %1115 = vmatprep.subr.bf16.mxu0 0
  %1116 = vmatpush1.bf16.msra.mxu0 %v1098
  %1117 = vmatprep.subr.bf16.mxu0 0
  %1118 = vmatpush1.bf16.msra.mxu0 0
  %1119 = vmatprep.subr.bf16.mxu0 0
  %1120 = vmatpush1.bf16.msra.mxu0 0
  %1121 = vmatprep.subr.bf16.mxu0 0
  %1122 = vmatpush1.bf16.msra.mxu0 0
  %1123 = vmatprep.subr.bf16.mxu0 0
  %1124 = vmatpush1.bf16.msra.mxu0 0
  %1125 = vmatprep.subr.bf16.mxu0 0
  %1126 = vmatpush1.bf16.msra.mxu0 0
  %1127 = vmatprep.subr.bf16.mxu0 0
  %1128 = vmatpush1.bf16.msra.mxu0 0
  %1129 = vmatprep.subr.bf16.mxu0 0
  %1130 = vmatpush1.bf16.msra.mxu0 0
  %1131 = vmatprep.subr.bf16.mxu0 0
  %1132 = vmatpush1.bf16.msra.mxu0 0
  %1133 = vmatprep.subr.bf16.mxu0 0
  %1134 = vmatpush1.bf16.msra.mxu0 0
  %1135 = vmatprep.subr.bf16.mxu0 0
  %1136 = vmatpush1.bf16.msra.mxu0 0
  %1137 = vmatprep.subr.bf16.mxu0 0
  %1138 = vmatpush1.bf16.msra.mxu0 0
  %1139 = vmatprep.subr.bf16.mxu0 0
  %1140 = vmatpush1.bf16.msra.mxu0 0
  %1141 = vmatprep.mubr.bf16.mxu0 0
  %1142 = vmatmul.mubr.bf16.gmra.mrb[0].mxu0 %v1104
  %v1143 = vpop.f32.mrb[0].mxu0
  %v1144 = vadd.f32 0.0, %v1143
  %v1145 = vpop.f32.mrb[0].mxu0
  %v1146 = vpop.f32.mrb[0].mxu0
  %v1147 = vadd.f32 0.0, %v1146
  %v1148 = vpop.f32.mrb[0].mxu0
  %1149 = vmatprep.mubr.bf16.mxu0 0
  %1150 = vmatmul.mubr.bf16.gmra.mrb[0].mxu0 %v1107
  %v1151 = vpop.f32.mrb[0].mxu0
  %v1152 = vadd.f32 0.0, %v1151
  %v1153 = vpop.f32.mrb[0].mxu0
  %v1154 = vpop.f32.mrb[0].mxu0
  %v1155 = vadd.f32 0.0, %v1154
  %v1156 = vpop.f32.mrb[0].mxu0
  %1157 = vdwg.mxu0
  %v1158 = vadd.f32 %v1056, %v1144
  %v1159 = vadd.f32 %v1057, %v1147
  %v1160 = vadd.f32 %v1058, %v1152
  %v1161 = vadd.f32 %v1059, %v1155
  %v1162 = vld [vmem:[#allocation3 + $0x5] sm:$0xff]
  %v1163 = vld [vmem:[#allocation3 + $0xd] sm:$0xff]
  %v1164 = vld [vmem:[#allocation3 + $0x15] sm:$0xff]
  %v1165 = vld [vmem:[#allocation3 + $0x1d] sm:$0xff]
  %v1166 = vsel %vm529, %v1162, 0.0
  %v1167 = vsel %vm530, %v1163, 0.0
  %v1168 = vsel %vm531, %v1164, 0.0
  %v1169 = vsel %vm532, %v1165, 0.0
  %v1170 = vpack.c.bf16 %v1167, %v1166
  %v1171 = vpack.c.bf16 %v1169, %v1168
  %s1172 = scalar_lea.vmem %s3, 160
  %v1173 = vld [vmem:[%s1172] sm:$0xf]
  %v1174 = vld [vmem:[%s1172 + $0x4] sm:$0xf]
  %v1175 = vld [vmem:[%s1172 + $0x8] sm:$0xf]
  %v1176 = vld [vmem:[%s1172 + $0xc] sm:$0xf]
  %v1177 = vld [vmem:[%s1172 + $0x10] sm:$0xf]
  %v1178 = vld [vmem:[%s1172 + $0x14] sm:$0xf]
  %v1179 = vld [vmem:[%s1172 + $0x18] sm:$0xf]
  %v1180 = vld [vmem:[%s1172 + $0x1c] sm:$0xf]
  %v1189 = vunpack.c.l.b16 %v1173
  %v1190 = vunpack.c.l.b16 %v1174
  %v1191 = vunpack.c.l.b16 %v1175
  %v1192 = vunpack.c.l.b16 %v1176
  %v1193 = vunpack.c.l.b16 %v1177
  %v1194 = vunpack.c.l.b16 %v1178
  %v1195 = vunpack.c.l.b16 %v1179
  %v1196 = vunpack.c.l.b16 %v1180
  %v1197 = vpack.c.b16 %v1190, %v1189
  %v1198 = vpack.c.b16 %v1192, %v1191
  %v1199 = vpack.c.b16 %v1194, %v1193
  %v1200 = vpack.c.b16 %v1196, %v1195
  %v1206 = vsel %vm81, %v1170, 0
  %v1209 = vsel %vm81, %v1171, 0
  %1211 = vmatprep.subr.bf16.mxu0 0
  %1212 = vmatpush1.bf16.msra.mxu0 %v1197
  %1213 = vmatprep.subr.bf16.mxu0 0
  %1214 = vmatpush1.bf16.msra.mxu0 %v1198
  %1215 = vmatprep.subr.bf16.mxu0 0
  %1216 = vmatpush1.bf16.msra.mxu0 %v1199
  %1217 = vmatprep.subr.bf16.mxu0 0
  %1218 = vmatpush1.bf16.msra.mxu0 %v1200
  %1219 = vmatprep.subr.bf16.mxu0 0
  %1220 = vmatpush1.bf16.msra.mxu0 0
  %1221 = vmatprep.subr.bf16.mxu0 0
  %1222 = vmatpush1.bf16.msra.mxu0 0
  %1223 = vmatprep.subr.bf16.mxu0 0
  %1224 = vmatpush1.bf16.msra.mxu0 0
  %1225 = vmatprep.subr.bf16.mxu0 0
  %1226 = vmatpush1.bf16.msra.mxu0 0
  %1227 = vmatprep.subr.bf16.mxu0 0
  %1228 = vmatpush1.bf16.msra.mxu0 0
  %1229 = vmatprep.subr.bf16.mxu0 0
  %1230 = vmatpush1.bf16.msra.mxu0 0
  %1231 = vmatprep.subr.bf16.mxu0 0
  %1232 = vmatpush1.bf16.msra.mxu0 0
  %1233 = vmatprep.subr.bf16.mxu0 0
  %1234 = vmatpush1.bf16.msra.mxu0 0
  %1235 = vmatprep.subr.bf16.mxu0 0
  %1236 = vmatpush1.bf16.msra.mxu0 0
  %1237 = vmatprep.subr.bf16.mxu0 0
  %1238 = vmatpush1.bf16.msra.mxu0 0
  %1239 = vmatprep.subr.bf16.mxu0 0
  %1240 = vmatpush1.bf16.msra.mxu0 0
  %1241 = vmatprep.subr.bf16.mxu0 0
  %1242 = vmatpush1.bf16.msra.mxu0 0
  %1243 = vmatprep.mubr.bf16.mxu0 0
  %1244 = vmatmul.mubr.bf16.gmra.mrb[0].mxu0 %v1206
  %v1245 = vpop.f32.mrb[0].mxu0
  %v1246 = vadd.f32 0.0, %v1245
  %v1247 = vpop.f32.mrb[0].mxu0
  %v1248 = vpop.f32.mrb[0].mxu0
  %v1249 = vadd.f32 0.0, %v1248
  %v1250 = vpop.f32.mrb[0].mxu0
  %1251 = vmatprep.mubr.bf16.mxu0 0
  %1252 = vmatmul.mubr.bf16.gmra.mrb[0].mxu0 %v1209
  %v1253 = vpop.f32.mrb[0].mxu0
  %v1254 = vadd.f32 0.0, %v1253
  %v1255 = vpop.f32.mrb[0].mxu0
  %v1256 = vpop.f32.mrb[0].mxu0
  %v1257 = vadd.f32 0.0, %v1256
  %v1258 = vpop.f32.mrb[0].mxu0
  %1259 = vdwg.mxu0
  %v1260 = vadd.f32 %v1158, %v1246
  %v1261 = vadd.f32 %v1159, %v1249
  %v1262 = vadd.f32 %v1160, %v1254
  %v1263 = vadd.f32 %v1161, %v1257
  %v1264 = vld [vmem:[#allocation3 + $0x6] sm:$0xff]
  %v1265 = vld [vmem:[#allocation3 + $0xe] sm:$0xff]
  %v1266 = vld [vmem:[#allocation3 + $0x16] sm:$0xff]
  %v1267 = vld [vmem:[#allocation3 + $0x1e] sm:$0xff]
  %vm1268 = vcmp.lt.s32.totalorder %v70, 13
  %vm1269 = vcmp.lt.s32.totalorder %v71, 13
  %vm1270 = vcmp.lt.s32.totalorder %v72, 13
  %vm1271 = vcmp.lt.s32.totalorder %v73, 13
  %v1272 = vsel %vm1268, 1, 0
  %v1273 = vsel %vm1269, 1, 0
  %v1274 = vsel %vm1270, 1, 0
  %v1275 = vsel %vm1271, 1, 0
  %vm1276 = vcmp.eq.s32.totalorder %v1272, 1
  %vm1277 = vcmp.eq.s32.totalorder %v1273, 1
  %vm1278 = vcmp.eq.s32.totalorder %v1274, 1
  %vm1279 = vcmp.eq.s32.totalorder %v1275, 1
  %v1280 = vsel %vm1276, %v1264, 0.0
  %v1281 = vsel %vm1277, %v1265, 0.0
  %v1282 = vsel %vm1278, %v1266, 0.0
  %v1283 = vsel %vm1279, %v1267, 0.0
  %v1284 = vpack.c.bf16 %v1281, %v1280
  %v1285 = vpack.c.bf16 %v1283, %v1282
  %s1286 = scalar_lea.vmem %s3, 192
  %v1287 = vld [vmem:[%s1286] sm:$0xf]
  %v1288 = vld [vmem:[%s1286 + $0x4] sm:$0xf]
  %v1289 = vld [vmem:[%s1286 + $0x8] sm:$0xf]
  %v1290 = vld [vmem:[%s1286 + $0xc] sm:$0xf]
  %v1291 = vld [vmem:[%s1286 + $0x10] sm:$0xf]
  %v1292 = vld [vmem:[%s1286 + $0x14] sm:$0xf]
  %v1293 = vld [vmem:[%s1286 + $0x18] sm:$0xf]
  %v1294 = vld [vmem:[%s1286 + $0x1c] sm:$0xf]
  %v1303 = vunpack.c.l.b16 %v1287
  %v1304 = vunpack.c.l.b16 %v1288
  %v1305 = vunpack.c.l.b16 %v1289
  %v1306 = vunpack.c.l.b16 %v1290
  %v1307 = vunpack.c.l.b16 %v1291
  %v1308 = vunpack.c.l.b16 %v1292
  %v1309 = vunpack.c.l.b16 %v1293
  %v1310 = vunpack.c.l.b16 %v1294
  %v1311 = vpack.c.b16 %v1304, %v1303
  %v1312 = vpack.c.b16 %v1306, %v1305
  %v1313 = vpack.c.b16 %v1308, %v1307
  %v1314 = vpack.c.b16 %v1310, %v1309
  %v1320 = vsel %vm81, %v1284, 0
  %v1323 = vsel %vm81, %v1285, 0
  %1325 = vmatprep.subr.bf16.mxu0 0
  %1326 = vmatpush1.bf16.msra.mxu0 %v1311
  %1327 = vmatprep.subr.bf16.mxu0 0
  %1328 = vmatpush1.bf16.msra.mxu0 %v1312
  %1329 = vmatprep.subr.bf16.mxu0 0
  %1330 = vmatpush1.bf16.msra.mxu0 %v1313
  %1331 = vmatprep.subr.bf16.mxu0 0
  %1332 = vmatpush1.bf16.msra.mxu0 %v1314
  %1333 = vmatprep.subr.bf16.mxu0 0
  %1334 = vmatpush1.bf16.msra.mxu0 0
  %1335 = vmatprep.subr.bf16.mxu0 0
  %1336 = vmatpush1.bf16.msra.mxu0 0
  %1337 = vmatprep.subr.bf16.mxu0 0
  %1338 = vmatpush1.bf16.msra.mxu0 0
  %1339 = vmatprep.subr.bf16.mxu0 0
  %1340 = vmatpush1.bf16.msra.mxu0 0
  %1341 = vmatprep.subr.bf16.mxu0 0
  %1342 = vmatpush1.bf16.msra.mxu0 0
  %1343 = vmatprep.subr.bf16.mxu0 0
  %1344 = vmatpush1.bf16.msra.mxu0 0
  %1345 = vmatprep.subr.bf16.mxu0 0
  %1346 = vmatpush1.bf16.msra.mxu0 0
  %1347 = vmatprep.subr.bf16.mxu0 0
  %1348 = vmatpush1.bf16.msra.mxu0 0
  %1349 = vmatprep.subr.bf16.mxu0 0
  %1350 = vmatpush1.bf16.msra.mxu0 0
  %1351 = vmatprep.subr.bf16.mxu0 0
  %1352 = vmatpush1.bf16.msra.mxu0 0
  %1353 = vmatprep.subr.bf16.mxu0 0
  %1354 = vmatpush1.bf16.msra.mxu0 0
  %1355 = vmatprep.subr.bf16.mxu0 0
  %1356 = vmatpush1.bf16.msra.mxu0 0
  %1357 = vmatprep.mubr.bf16.mxu0 0
  %1358 = vmatmul.mubr.bf16.gmra.mrb[0].mxu0 %v1320
  %v1359 = vpop.f32.mrb[0].mxu0
  %v1360 = vadd.f32 0.0, %v1359
  %v1361 = vpop.f32.mrb[0].mxu0
  %v1362 = vpop.f32.mrb[0].mxu0
  %v1363 = vadd.f32 0.0, %v1362
  %v1364 = vpop.f32.mrb[0].mxu0
  %1365 = vmatprep.mubr.bf16.mxu0 0
  %1366 = vmatmul.mubr.bf16.gmra.mrb[0].mxu0 %v1323
  %v1367 = vpop.f32.mrb[0].mxu0
  %v1368 = vadd.f32 0.0, %v1367
  %v1369 = vpop.f32.mrb[0].mxu0
  %v1370 = vpop.f32.mrb[0].mxu0
  %v1371 = vadd.f32 0.0, %v1370
  %v1372 = vpop.f32.mrb[0].mxu0
  %1373 = vdwg.mxu0
  %v1374 = vadd.f32 %v1260, %v1360
  %v1375 = vadd.f32 %v1261, %v1363
  %v1376 = vadd.f32 %v1262, %v1368
  %v1377 = vadd.f32 %v1263, %v1371
  %v1378 = vld [vmem:[%s4] sm:$0x1]
  %v1380 = vlaneseq
  %v1381 = vshrl.u32 %v1380, 7
  %v1382 = vsub.s32 0, %v1381
  %v1383 = vrot.slane %v1378, %v1382
  %v1385 = vadd.f32 %v1374, %v1383
  %v1386 = vadd.f32 %v1375, %v1383
  %v1387 = vadd.f32 %v1376, %v1383
  %v1388 = vadd.f32 %v1377, %v1383
  %1389 = vst [vmem:[%s5] sm:$0xff] %v1385
  %1390 = vst [vmem:[%s5 + $0x8] sm:$0xff] %v1386
  %1391 = vst [vmem:[%s5 + $0x10] sm:$0xff] %v1387
  %1392 = vst [vmem:[%s5 + $0x18] sm:$0xff] %v1388
  // Predicated region
  $region22: #{embedding_conv_reducer_forward.1} parent=0 // pred_check
    _
  $region23: #{embedding_conv_reducer_forward.1} parent=0 // pred_check_branch
    %1394 = sbr.rel (0) target = $region25
  $region24: #{embedding_conv_reducer_forward.1} parent=0 // pred_region
    _
  $region25: #{embedding_conv_reducer_forward.1} parent=0 // pred_fallthru
    _
  // Predicated region
  $region26: #{embedding_conv_reducer_forward.1} parent=0 // pred_check
    _
  $region27: #{embedding_conv_reducer_forward.1} parent=0 // pred_check_branch
    %1396 = sbr.rel (0) target = $region29
  $region28: #{embedding_conv_reducer_forward.1} parent=0 // pred_region
    _
  $region29: #{embedding_conv_reducer_forward.1} parent=0 // pred_fallthru
    _

</llo_original>
